<compile_context>
chip_gen: v6e
topology: v6e:2x2x1
jax: 0.10.0
libtpu: 0.0.40
codegen_flags: <defaults>
</compile_context>

<pallas_src>
import functools

import jax
import jax.numpy as jnp
from jax.experimental import pallas as pl
from jax.experimental.pallas import tpu as pltpu


def _round_up(x, m):
    return (x + m - 1) // m * m


def _cdiv(a, b):
    return (a + b - 1) // b


def _residual_conv1x1_kernel(x_ref, w_ref, b_ref, o_ref, *, precision):
    # x_ref: (bn, C, tl)   slab: bn images x all channels x tl spatial lanes
    # w_ref: (C_out, C_in) 1x1-conv weight in PyTorch layout (no transpose)
    # b_ref: (C_out, 1)    bias
    x = x_ref[...]
    y = jnp.einsum("oi,bil->bol", w_ref[...], x,          # fn(x): 1x1 conv (MXU)
                   preferred_element_type=jnp.float32,
                   precision=precision)
    # fn(x) + x   (residual add in f32, cast back to output dtype)
    o_ref[...] = (y + b_ref[...] + x.astype(jnp.float32)).astype(o_ref.dtype)


def _vmem_budget_and_limit():
    """Generation-aware VMEM budget for our tiles and scoped-VMEM limit."""
    try:
        cap = pltpu.get_tpu_info().vmem_capacity_bytes
    except Exception:
        cap = 64 * 1024 * 1024          # conservative: v7x per-TC physical VMEM
    budget = min(cap // 2, 96 * 1024 * 1024)        # v6e: 64 MiB, v7x: 32 MiB
    limit = min(cap * 5 // 8, budget + 16 * 1024 * 1024)   # v6e: 80, v7x: 40 MiB
    return budget, limit


def _pick_tiling(N, C, L, itemsize, vmem_budget):
    """Choose (bn images per block, tl lanes per block)."""
    sublane = max(8, 32 // itemsize)                 # 8 f32 / 16 bf16 / 32 int8
    c_pad = _round_up(C, sublane)
    l128 = _round_up(L, 128)

    # Weight (C,C) + bias (C,1), sublane/lane padded, double-buffered by the
    # pipeline even though their block index is constant.
    resident = 2 * (c_pad * _round_up(C, 128) + c_pad * 128) * itemsize
    if resident >= vmem_budget:
        # TODO(synk): add a C_in-tiled (K-reduction grid axis) path for very
        # large channel counts instead of failing here.
        raise ValueError(
            f"1x1-conv weight ({resident} B double-buffered) does not fit the "
            f"VMEM budget ({vmem_budget} B); C={C} needs a K-tiled kernel.")

    # Pack images so each step moves >= ~2048 lanes (amortize per-step cost).
    bn = max(1, min(N, _cdiv(2048, l128)))

    # Largest lane tile whose double-buffered in+out blocks fit the budget.
    avail = vmem_budget - resident
    tl_cap = max(128, (avail // (4 * bn * c_pad * itemsize)) // 128 * 128)
    tl = min(l128, tl_cap)

    # Guarantee >= 2 grid steps when the work allows it, so v7x's two
    # TensorCores can both be used (harmless on single-TC v5e/v6e).
    if _cdiv(N, bn) * _cdiv(L, tl) < 2:
        if N > 1:
            bn = _cdiv(N, 2)
        elif L > 128:
            tl = max(128, _round_up(_cdiv(L, 2), 128))
    return bn, tl


def residual_conv1x1(x_nchw, weight_oc_ic, bias_o):
    """Conv2d(C, C, 1)(x) + x, matching PyTorch Residual(fn) semantics.

    x_nchw:       (N, C, H, W)    f32 or bf16
    weight_oc_ic: (C_out, C_in)   PyTorch conv weight (O, I, 1, 1) squeezed
    bias_o:       (C_out,)
    returns:      (N, C, H, W)
    """
    N, C, H, W = x_nchw.shape
    L = H * W
    itemsize = jnp.dtype(x_nchw.dtype).itemsize

    vmem_budget, vmem_limit = _vmem_budget_and_limit()
    bn, tl = _pick_tiling(N, C, L, itemsize, vmem_budget)

    # Free metadata reshape (stays NCHW; no transpose, no extra HBM traffic).
    x3 = x_nchw.reshape(N, C, L)
    w = weight_oc_ic                    # (C_out, C_in): y = w @ x
    b = bias_o.reshape(C, 1)

    # HIGHEST is free when the matmul is tiny; HIGH avoids the 6-pass f32
    # decomposition on the MXU once C is large (memory-bound either way).
    precision = (jax.lax.Precision.HIGHEST if C < 128
                 else jax.lax.Precision.HIGH)
    kernel = functools.partial(_residual_conv1x1_kernel, precision=precision)

    grid = (pl.cdiv(N, bn), pl.cdiv(L, tl))
    out3 = pl.pallas_call(
        kernel,
        out_shape=jax.ShapeDtypeStruct((N, C, L), x3.dtype),
        grid_spec=pltpu.PrefetchScalarGridSpec(
            num_scalar_prefetch=0,
            grid=grid,
            in_specs=[
                # x slab: (bn, C, tl) with lanes = spatial; ragged edges in the
                # batch / spatial axes are handled by Pallas (OOB lanes hold
                # unspecified values but are never written back, and the
                # contraction is over C only so they cannot leak into valid
                # output lanes).
                pl.BlockSpec((bn, C, tl), lambda n, l: (n, 0, l)),
                pl.BlockSpec((C, C), lambda n, l: (0, 0)),   # weight (resident)
                pl.BlockSpec((C, 1), lambda n, l: (0, 0)),   # bias   (resident)
            ],
            out_specs=pl.BlockSpec((bn, C, tl), lambda n, l: (n, 0, l)),
        ),
        compiler_params=pltpu.CompilerParams(
            dimension_semantics=("parallel", "parallel"),
            vmem_limit_bytes=vmem_limit),
    )(x3, w, b)

    return out3.reshape(N, C, H, W)


if __name__ == "__main__":
    key = jax.random.PRNGKey(0)
    kx, kw, kb = jax.random.split(key, 3)

    N, C, H, W = 2, 4, 16, 16
    x = jax.random.normal(kx, (N, C, H, W), dtype=jnp.float32)

    # Deterministic synthetic parameters for fn = Conv2d(C, C, 1)
    weight = jax.random.normal(kw, (C, C), dtype=jnp.float32) * 0.1   # (O, I)
    bias = jax.random.normal(kb, (C,), dtype=jnp.float32) * 0.1

    out = residual_conv1x1(x, weight, bias)
    out = jax.block_until_ready(out)

    # Reference check in plain JAX (1x1 conv in NCHW + residual)
    ref = jnp.einsum("oi,nihw->nohw", weight, x) + bias[None, :, None, None] + x
    assert out.shape == x.shape
    assert jnp.allclose(out, ref, atol=1e-5, rtol=1e-5)

    print("KERNEL_OK")
</pallas_src>

<mosaic_0001>
module attributes {stable_mosaic.version = 11 : i64} {
  func.func @_residual_conv1x1_kernel(%arg0: i32, %arg1: i32, %arg2: memref<1x4x256xf32, #tpu.memory_space<vmem>>, %arg3: memref<4x4xf32, #tpu.memory_space<vmem>>, %arg4: memref<4x1xf32, #tpu.memory_space<vmem>>, %arg5: memref<1x4x256xf32, #tpu.memory_space<vmem>>) attributes {dimension_semantics = [#tpu.dimension_semantics<parallel>, #tpu.dimension_semantics<parallel>], iteration_bounds = array<i64: 2, 1>, scalar_prefetch = 0 : i64, scratch_operands = 0 : i64, tpu.core_type = #tpu.core_type<tc>, window_params = [{transform_indices = @transform_0, window_bounds = array<i64: 1, 4, 256>}, {pipeline_mode = #tpu.pipeline_mode<synchronous>, transform_indices = @transform_1, window_bounds = array<i64: 4, 4>}, {pipeline_mode = #tpu.pipeline_mode<synchronous>, transform_indices = @transform_2, window_bounds = array<i64: 4, 1>}, {transform_indices = @transform_3, window_bounds = array<i64: 1, 4, 256>}]} {
    %c0 = arith.constant 0 : index
    %c0_0 = arith.constant 0 : index
    %c0_1 = arith.constant 0 : index
    %0 = vector.load %arg2[%c0, %c0_0, %c0_1] : memref<1x4x256xf32, #tpu.memory_space<vmem>>, vector<1x4x256xf32>
    %c0_2 = arith.constant 0 : index
    %c0_3 = arith.constant 0 : index
    %1 = vector.load %arg3[%c0_2, %c0_3] : memref<4x4xf32, #tpu.memory_space<vmem>>, vector<4x4xf32>
    "tpu.trace_start"() <{level = 10 : i32, message = "oi,bil->bol"}> : () -> ()
    %cst = arith.constant dense<0.000000e+00> : vector<1x256x4xf32>
    %2 = tpu.matmul %0, %1, %cst {dimension_numbers = #tpu.dot_dimension_numbers<[1], [1], [0, 2], [0], [0, 0, 0, 2, 1, 0], [], []>, precision = #tpu.contract_precision<fp32>} : vector<1x4x256xf32>, vector<4x4xf32>, vector<1x256x4xf32> -> vector<1x256x4xf32>
    %3 = tpu.transpose %2, [0, 2, 1] : vector<1x256x4xf32> -> vector<1x4x256xf32>
    "tpu.trace_stop"() : () -> ()
    %c0_4 = arith.constant 0 : index
    %c0_5 = arith.constant 0 : index
    %4 = vector.load %arg4[%c0_4, %c0_5] : memref<4x1xf32, #tpu.memory_space<vmem>>, vector<4x1xf32>
    %5 = vector.shape_cast %4 : vector<4x1xf32> to vector<1x4x1xf32>
    %6 = vector.broadcast %5 : vector<1x4x1xf32> to vector<1x4x256xf32>
    %7 = arith.addf %3, %6 : vector<1x4x256xf32>
    %8 = arith.addf %7, %0 : vector<1x4x256xf32>
    %c0_6 = arith.constant 0 : index
    %c0_7 = arith.constant 0 : index
    %c0_8 = arith.constant 0 : index
    %9 = vector.load %arg5[%c0_6, %c0_7, %c0_8] : memref<1x4x256xf32, #tpu.memory_space<vmem>>, vector<1x4x256xf32>
    tpu.vector_store %arg5[%c0_6, %c0_7, %c0_8], %8 {strides = array<i32>} : memref<1x4x256xf32, #tpu.memory_space<vmem>>, vector<1x4x256xf32>,
    return
  }
  func.func @transform_0(%arg0: i32, %arg1: i32) -> (i32, i32, i32) {
    %c0_i32 = arith.constant 0 : i32
    %c0_i32_0 = arith.constant 0 : i32
    return %arg0, %c0_i32, %arg1 : i32, i32, i32
  }
  func.func @transform_1(%arg0: i32, %arg1: i32) -> (i32, i32) {
    %c0_i32 = arith.constant 0 : i32
    %c0_i32_0 = arith.constant 0 : i32
    %c0_i32_1 = arith.constant 0 : i32
    return %c0_i32, %c0_i32_0 : i32, i32
  }
  func.func @transform_2(%arg0: i32, %arg1: i32) -> (i32, i32) {
    %c0_i32 = arith.constant 0 : i32
    %c0_i32_0 = arith.constant 0 : i32
    %c0_i32_1 = arith.constant 0 : i32
    return %c0_i32, %c0_i32_0 : i32, i32
  }
  func.func @transform_3(%arg0: i32, %arg1: i32) -> (i32, i32, i32) {
    %c0_i32 = arith.constant 0 : i32
    %c0_i32_0 = arith.constant 0 : i32
    return %arg0, %c0_i32, %arg1 : i32, i32, i32
  }
}

</mosaic_0001>

<llo_original>
// kernel: tpu_custom_call.1
$region0: #{tpu_custom_call.1}
  #allocation0 [shape = 'u32[]', space=smem, size = 0x4, offset = 0x4, fixed_abs, tag = 'smem constant byte address 0x4 - core index']
  #allocation1 [shape = 'u32[144,128]{1,0:T(1,128)}', space=vmem, size = 0x12000, scoped, tag = 'internal scratch']
  %s0 = inlined_call_operand.hbm [shape: f32[2,4,256], index: 0, kind: input, shape index: {}]
  %s1 = inlined_call_operand.vmem [shape: f32[4,4], index: 1, kind: input, shape index: {}]
  %s2 = inlined_call_operand.vmem [shape: f32[4,1], index: 2, kind: input, shape index: {}]
  %s3 = inlined_call_operand.hbm [shape: f32[2,4,256], index: 3, kind: output, shape index: {}]
  %s4 = sld [smem:[#allocation0]]
  $region49: #{tpu_custom_call.1} parent=0
    _
  %s6 = ssub.s32 1, %s4
  %s7 = scalar_select 0, %s6, %s4
  $region1: #{tpu_custom_call.1} parent=0
    #allocation2 [shape = 'u8[8192]{0}', space=vmem, size = 0x2000, scoped, tag = 'input window, operand 0']
    #allocation3 [shape = 's32[2]{0}', space=sflag, size = 0x8, scoped, tag = 'scoped memory for tpu_custom_call.1']
    #allocation4 [shape = 's32[2]{0}', space=sflag, size = 0x8, scoped, tag = 'scoped memory for tpu_custom_call.1']
    #allocation5 [shape = 'u8[8192]{0}', space=vmem, size = 0x2000, scoped, tag = 'output window, operand 0']
    %8 = vsyncpa [#allocation3], 0
    %s9 = scalar_lea.sflag [#allocation3], 1
    %10 = vsyncpa %s9, 0
    %11 = vsyncpa [#allocation4], 0
    %s12 = scalar_lea.sflag [#allocation4], 1
    %13 = vsyncpa %s12, 0
    loop: start=0, step=1, limit=4
    $region2: #{tpu_custom_call.1} parent=1 // loop_pre_header
      _
    $region3: #{tpu_custom_call.1} parent=1 // loop_header
      %s15 = sphi 0, %s19
      %p16 = scmp.ge.s32.totalorder %s15, 4
      %s22 = sphi 0, %s34
      %s23 = sphi 0, %s30
      %s24 = sphi 0, %s22
      %s25 = sphi 0, %s23
      %s26 = sphi 0, %s24
      %s27 = sphi 0, %s25
      %s39 = sphi 0, %s41
      %s42 = sphi 0, %s39
      %s43 = sphi 0, %s42
      %s59 = sphi 0, %s43
      %s63 = sphi 0, %s63
      %s65 = sphi 0, %s63
      %s66 = sphi 0, %s65
      %s80 = sphi 0, %s66
      %s84 = sphi 0, %s84
      %s86 = sphi 0, %s84
      %s87 = sphi 0, %s86
      %s101 = sphi 0, %s87
      %s109 = sphi 0, %s111
      %s112 = sphi 0, %s109
      %s113 = sphi 0, %s112
      %s129 = sphi 0, %s113
    $region4: #{tpu_custom_call.1} parent=1 // loop_header_branch
      %18 = sbr.rel (%p16) target = $region8
    $region5: #{tpu_custom_call.1} parent=1 // loop_body
      %s20 = ssub.s32 %s15, 1
      %s21 = ssub.s32 %s15, 2
      %s28 = sadd.s32 1, %s23
      %p29 = scmp.ge.s32.totalorder %s28, 1
      %s30 = scalar_select %p29, 0, %s28
      %s31 = sadd.s32 1, %s22
      %s32 = scalar_select %p29, %s31, %s22
      %p33 = scmp.ge.s32.totalorder %s32, 2
      %s34 = scalar_select %p33, 0, %s32
      %s35 = ssub.s32 %s22, %s34
      %s36 = ssub.s32 %s23, %s30
      %s37 = sor.u32 %s35, %s36
      %p38 = scmp.eq.s32.totalorder %s37, 0
      %s40 = sadd.s32 %s39, 1
      %s41 = scalar_select %p38, %s39, %s40
      %p44 = pneg %p38
      %p45 = scmp.eq.s32.totalorder %s15, 1
      %p46 = por %p44, %p45
      %p47 = scmp.ne.s32.totalorder %s39, %s42
      %p48 = scmp.eq.s32.totalorder %s15, 0
      %p49 = por %p47, %p48
      %p50 = scmp.ne.s32.totalorder %s39, %s42
      %p51 = scmp.eq.s32.totalorder %s20, 1
      %p52 = por %p50, %p51
      %p53 = scmp.ne.s32.totalorder %s42, %s43
      %p54 = scmp.eq.s32.totalorder %s20, 0
      %p55 = por %p53, %p54
      %p56 = scmp.ne.s32.totalorder %s42, %s43
      %p57 = scmp.eq.s32.totalorder %s21, 1
      %p58 = por %p56, %p57
      %p60 = scmp.ne.s32.totalorder %s43, %s59
      %p61 = scmp.eq.s32.totalorder %s21, 0
      %p62 = por %p60, %p61
      %s64 = sadd.s32 %s63, 1
      %p67 = scmp.eq.s32.totalorder %s15, 1
      %p68 = scmp.ne.s32.totalorder %s63, %s65
      %p69 = scmp.eq.s32.totalorder %s15, 0
      %p70 = por %p68, %p69
      %p71 = scmp.ne.s32.totalorder %s63, %s65
      %p72 = scmp.eq.s32.totalorder %s20, 1
      %p73 = por %p71, %p72
      %p74 = scmp.ne.s32.totalorder %s65, %s66
      %p75 = scmp.eq.s32.totalorder %s20, 0
      %p76 = por %p74, %p75
      %p77 = scmp.ne.s32.totalorder %s65, %s66
      %p78 = scmp.eq.s32.totalorder %s21, 1
      %p79 = por %p77, %p78
      %p81 = scmp.ne.s32.totalorder %s66, %s80
      %p82 = scmp.eq.s32.totalorder %s21, 0
      %p83 = por %p81, %p82
      %s85 = sadd.s32 %s84, 1
      %p88 = scmp.eq.s32.totalorder %s15, 1
      %p89 = scmp.ne.s32.totalorder %s84, %s86
      %p90 = scmp.eq.s32.totalorder %s15, 0
      %p91 = por %p89, %p90
      %p92 = scmp.ne.s32.totalorder %s84, %s86
      %p93 = scmp.eq.s32.totalorder %s20, 1
      %p94 = por %p92, %p93
      %p95 = scmp.ne.s32.totalorder %s86, %s87
      %p96 = scmp.eq.s32.totalorder %s20, 0
      %p97 = por %p95, %p96
      %p98 = scmp.ne.s32.totalorder %s86, %s87
      %p99 = scmp.eq.s32.totalorder %s21, 1
      %p100 = por %p98, %p99
      %p102 = scmp.ne.s32.totalorder %s87, %s101
      %p103 = scmp.eq.s32.totalorder %s21, 0
      %p104 = por %p102, %p103
      %s105 = ssub.s32 %s22, %s34
      %s106 = ssub.s32 %s23, %s30
      %s107 = sor.u32 %s105, %s106
      %p108 = scmp.eq.s32.totalorder %s107, 0
      %s110 = sadd.s32 %s109, 1
      %s111 = scalar_select %p108, %s109, %s110
      %p114 = pneg %p108
      %p115 = scmp.eq.s32.totalorder %s15, 1
      %p116 = por %p114, %p115
      %p117 = scmp.ne.s32.totalorder %s109, %s112
      %p118 = scmp.eq.s32.totalorder %s15, 0
      %p119 = por %p117, %p118
      %p120 = scmp.ne.s32.totalorder %s109, %s112
      %p121 = scmp.eq.s32.totalorder %s20, 1
      %p122 = por %p120, %p121
      %p123 = scmp.ne.s32.totalorder %s112, %s113
      %p124 = scmp.eq.s32.totalorder %s20, 0
      %p125 = por %p123, %p124
      %p126 = scmp.ne.s32.totalorder %s112, %s113
      %p127 = scmp.eq.s32.totalorder %s21, 1
      %p128 = por %p126, %p127
      %p130 = scmp.ne.s32.totalorder %s113, %s129
      %p131 = scmp.eq.s32.totalorder %s21, 0
      %p132 = por %p130, %p131
      %p133 = scmp.le.s32.totalorder 1, %s15
      %p134 = scmp.lt.s32.totalorder %s15, 3
      %p135 = pnand %p133, %p134
      %p136 = pneg %p135
      // Predicated region
      $region9: #{tpu_custom_call.1} parent=5 // pred_check
        _
      $region10: #{tpu_custom_call.1} parent=5 // pred_check_branch
        %138 = sbr.rel (%p135) target = $region12
      $region11: #{tpu_custom_call.1} parent=5 // pred_region
        %s139 = ssub.s32 %s15, 1
        // Predicated region
        $region13: #{tpu_custom_call.1} parent=11 // pred_check
          %p140 = pneg %p76
        $region14: #{tpu_custom_call.1} parent=11 // pred_check_branch
          %142 = sbr.rel (%p140) target = $region16
        $region15: #{tpu_custom_call.1} parent=11 // pred_region
          _
        $region16: #{tpu_custom_call.1} parent=11 // pred_fallthru
          _
        // Predicated region
        $region17: #{tpu_custom_call.1} parent=11 // pred_check
          %p143 = pneg %p97
        $region18: #{tpu_custom_call.1} parent=11 // pred_check_branch
          %145 = sbr.rel (%p143) target = $region20
        $region19: #{tpu_custom_call.1} parent=11 // pred_region
          _
        $region20: #{tpu_custom_call.1} parent=11 // pred_fallthru
          _
      $region12: #{tpu_custom_call.1} parent=5 // pred_fallthru
        _
      %p146 = scmp.lt.s32.totalorder %s15, 2
      // Predicated region
      $region21: #{tpu_custom_call.1} parent=5 // pred_check
        %p147 = pneg %p146
      $region22: #{tpu_custom_call.1} parent=5 // pred_check_branch
        %149 = sbr.rel (%p147) target = $region24
      $region23: #{tpu_custom_call.1} parent=5 // pred_region
        // Predicated region
        $region25: #{tpu_custom_call.1} parent=23 // pred_check
          %p150 = pneg %p49
        $region26: #{tpu_custom_call.1} parent=23 // pred_check_branch
          %152 = sbr.rel (%p150) target = $region28
        $region27: #{tpu_custom_call.1} parent=23 // pred_region
          %s153 = sand.u32 %s39, 1
          %s154 = scalar_lea.sflag [#allocation3], %s153
          %s155 = sand.u32 %s39, 1
          %s156 = smul.addr %s155, 8
          %s157 = scalar_lea.vmem [#allocation2], %s156
          %s158 = smul.u32 2, %s23
          %s160 = ssub.s32 128, 128
          %161 = vsyncadd %s154, %s160
          %s162 = smul.addr %s22, 2
          %s163 = sadd.s32 %s158, %s162
          %s164 = smul.addr %s163, 64
          %s165 = scalar_lea.hbm %s0, %s164
          %s167 = sshll.u32 %s157, 4
          %s168 = int_to_ptr.vmem [resolvable:$true] %s167
          %170 = dma.hbm_to_vmem [thread:$0]  %s165, 128, %s168, %s154
        $region28: #{tpu_custom_call.1} parent=23 // pred_fallthru
          _
      $region24: #{tpu_custom_call.1} parent=5 // pred_fallthru
        _
      %p171 = scmp.le.s32.totalorder 1, %s15
      %p172 = scmp.lt.s32.totalorder %s15, 3
      %p173 = pnand %p171, %p172
      %p174 = pneg %p173
      // Predicated region
      $region29: #{tpu_custom_call.1} parent=5 // pred_check
        _
      $region30: #{tpu_custom_call.1} parent=5 // pred_check_branch
        %176 = sbr.rel (%p173) target = $region32
      $region31: #{tpu_custom_call.1} parent=5 // pred_region
        %s177 = ssub.s32 %s15, 1
        %s178 = sand.u32 %s42, 1
        %s179 = scalar_lea.sflag [#allocation3], %s178
        %s180 = sand.u32 %s42, 1
        %s181 = smul.addr %s180, 8
        %s182 = scalar_lea.vmem [#allocation2], %s181
        // Predicated region
        $region33: #{tpu_custom_call.1} parent=31 // pred_check
          %p183 = pneg %p55
        $region34: #{tpu_custom_call.1} parent=31 // pred_check_branch
          %185 = sbr.rel (%p183) target = $region36
        $region35: #{tpu_custom_call.1} parent=31 // pred_region
          %186 = dma.done %s179, 128
        $region36: #{tpu_custom_call.1} parent=31 // pred_fallthru
          _
        %s187 = sand.u32 %s42, 1
        %s188 = scalar_lea.sflag [#allocation3], %s187
        %s189 = sand.u32 %s42, 1
        %s190 = smul.addr %s189, 8
        %s191 = scalar_lea.vmem [#allocation2], %s190
        %p192 = pneg %p55
        %p193 = pneg %p52
        %p194 = pneg %p76
        %p195 = pneg %p73
        %p196 = pneg %p97
        %p197 = pneg %p94
        %p198 = pneg %p125
        %p199 = pneg %p122
        %s200 = sand.u32 %s112, 1
        %s201 = scalar_lea.sflag [#allocation4], %s200
        %s202 = sand.u32 %s112, 1
        %s203 = smul.addr %s202, 8
        %s204 = scalar_lea.vmem [#allocation5], %s203
        %s205 = smul.u32 2, %s25
        %s206 = smul.u32 2, %s25
        %v207 = vld [vmem:[%s182] sm:$0xff]
        %v208 = vld [vmem:[%s1] sm:$0xf]
        %v210 = vcombine.high %v207, %v207
        %212 = vxpose.xlu0.b32.start [1/16] %v207, 128
        %213 = vxpose.xlu0.b32.cont [2/16] 0.0, 128
        %214 = vxpose.xlu0.b32.cont [3/16] 0.0, 128
        %215 = vxpose.xlu0.b32.cont [4/16] 0.0, 128
        %216 = vxpose.xlu0.b32.cont [5/16] 0.0, 128
        %217 = vxpose.xlu0.b32.cont [6/16] 0.0, 128
        %218 = vxpose.xlu0.b32.cont [7/16] 0.0, 128
        %219 = vxpose.xlu0.b32.cont [8/16] 0.0, 128
        %220 = vxpose.xlu0.b32.cont [9/16] 0.0, 128
        %221 = vxpose.xlu0.b32.cont [10/16] 0.0, 128
        %222 = vxpose.xlu0.b32.cont [11/16] 0.0, 128
        %223 = vxpose.xlu0.b32.cont [12/16] 0.0, 128
        %224 = vxpose.xlu0.b32.cont [13/16] 0.0, 128
        %225 = vxpose.xlu0.b32.cont [14/16] 0.0, 128
        %226 = vxpose.xlu0.b32.cont [15/16] 0.0, 128
        %227 = vxpose.xlu0.b32.end [16/16] 0.0, 128
        %v228 = vpop.trf.xlu0
        %v229 = vpop.trf.xlu0
        %v230 = vpop.trf.xlu0
        %v231 = vpop.trf.xlu0
        %v232 = vpop.trf.xlu0
        %v233 = vpop.trf.xlu0
        %v234 = vpop.trf.xlu0
        %v235 = vpop.trf.xlu0
        %v236 = vpop.trf.xlu0
        %v237 = vpop.trf.xlu0
        %v238 = vpop.trf.xlu0
        %v239 = vpop.trf.xlu0
        %v240 = vpop.trf.xlu0
        %v241 = vpop.trf.xlu0
        %v242 = vpop.trf.xlu0
        %v243 = vpop.trf.xlu0
        %244 = vxpose.xlu0.b32.start [1/16] %v210, 128
        %245 = vxpose.xlu0.b32.cont [2/16] 0.0, 128
        %246 = vxpose.xlu0.b32.cont [3/16] 0.0, 128
        %247 = vxpose.xlu0.b32.cont [4/16] 0.0, 128
        %248 = vxpose.xlu0.b32.cont [5/16] 0.0, 128
        %249 = vxpose.xlu0.b32.cont [6/16] 0.0, 128
        %250 = vxpose.xlu0.b32.cont [7/16] 0.0, 128
        %251 = vxpose.xlu0.b32.cont [8/16] 0.0, 128
        %252 = vxpose.xlu0.b32.cont [9/16] 0.0, 128
        %253 = vxpose.xlu0.b32.cont [10/16] 0.0, 128
        %254 = vxpose.xlu0.b32.cont [11/16] 0.0, 128
        %255 = vxpose.xlu0.b32.cont [12/16] 0.0, 128
        %256 = vxpose.xlu0.b32.cont [13/16] 0.0, 128
        %257 = vxpose.xlu0.b32.cont [14/16] 0.0, 128
        %258 = vxpose.xlu0.b32.cont [15/16] 0.0, 128
        %259 = vxpose.xlu0.b32.end [16/16] 0.0, 128
        %v260 = vpop.trf.xlu0
        %v261 = vpop.trf.xlu0
        %v262 = vpop.trf.xlu0
        %v263 = vpop.trf.xlu0
        %v264 = vpop.trf.xlu0
        %v265 = vpop.trf.xlu0
        %v266 = vpop.trf.xlu0
        %v267 = vpop.trf.xlu0
        %v268 = vpop.trf.xlu0
        %v269 = vpop.trf.xlu0
        %v270 = vpop.trf.xlu0
        %v271 = vpop.trf.xlu0
        %v272 = vpop.trf.xlu0
        %v273 = vpop.trf.xlu0
        %v274 = vpop.trf.xlu0
        %v275 = vpop.trf.xlu0
        %vm276 = vcmask 31744
        %v278 = vsel %vm276, %v228, 0
        %v281 = vsel %vm276, %v229, 0
        %v284 = vsel %vm276, %v230, 0
        %v287 = vsel %vm276, %v231, 0
        %v290 = vsel %vm276, %v232, 0
        %v293 = vsel %vm276, %v233, 0
        %v296 = vsel %vm276, %v234, 0
        %v299 = vsel %vm276, %v235, 0
        %v302 = vsel %vm276, %v236, 0
        %v305 = vsel %vm276, %v237, 0
        %v308 = vsel %vm276, %v238, 0
        %v311 = vsel %vm276, %v239, 0
        %v314 = vsel %vm276, %v240, 0
        %v317 = vsel %vm276, %v241, 0
        %v320 = vsel %vm276, %v242, 0
        %v323 = vsel %vm276, %v243, 0
        %v326 = vsel %vm276, %v260, 0
        %v329 = vsel %vm276, %v261, 0
        %v332 = vsel %vm276, %v262, 0
        %v335 = vsel %vm276, %v263, 0
        %v338 = vsel %vm276, %v264, 0
        %v341 = vsel %vm276, %v265, 0
        %v344 = vsel %vm276, %v266, 0
        %v347 = vsel %vm276, %v267, 0
        %v350 = vsel %vm276, %v268, 0
        %v353 = vsel %vm276, %v269, 0
        %v356 = vsel %vm276, %v270, 0
        %v359 = vsel %vm276, %v271, 0
        %v362 = vsel %vm276, %v272, 0
        %v365 = vsel %vm276, %v273, 0
        %v368 = vsel %vm276, %v274, 0
        %v371 = vsel %vm276, %v275, 0
        %v374 = vsel %vm276, %v208, 0
        %376 = vmatprep.subr.mxu0 0.0
        %377 = vmatpush1.xpose.msra.mxu0 0.0
        %378 = vmatprep.subr.mxu0 0.0
        %379 = vmatpush1.xpose.msra.mxu0 0.0
        %380 = vmatprep.subr.mxu0 0.0
        %381 = vmatpush1.xpose.msra.mxu0 0.0
        %382 = vmatprep.subr.mxu0 0.0
        %383 = vmatpush1.xpose.msra.mxu0 0.0
        %384 = vmatprep.subr.mxu0 0.0
        %385 = vmatpush1.xpose.msra.mxu0 0.0
        %386 = vmatprep.subr.mxu0 0.0
        %387 = vmatpush1.xpose.msra.mxu0 0.0
        %388 = vmatprep.subr.mxu0 0.0
        %389 = vmatpush1.xpose.msra.mxu0 0.0
        %390 = vmatprep.subr.mxu0 0.0
        %391 = vmatpush1.xpose.msra.mxu0 0.0
        %392 = vmatprep.subr.mxu0 0.0
        %393 = vmatpush1.xpose.msra.mxu0 0.0
        %394 = vmatprep.subr.mxu0 0.0
        %395 = vmatpush1.xpose.msra.mxu0 0.0
        %396 = vmatprep.subr.mxu0 0.0
        %397 = vmatpush1.xpose.msra.mxu0 0.0
        %398 = vmatprep.subr.mxu0 0.0
        %399 = vmatpush1.xpose.msra.mxu0 0.0
        %400 = vmatprep.subr.mxu0 0.0
        %401 = vmatpush1.xpose.msra.mxu0 0.0
        %402 = vmatprep.subr.mxu0 0.0
        %403 = vmatpush1.xpose.msra.mxu0 0.0
        %404 = vmatprep.subr.mxu0 0.0
        %405 = vmatpush1.xpose.msra.mxu0 0.0
        %406 = vmatprep.subr.mxu0 0.0
        %v407 = vand.u32 %v374, 4294901760
        %408 = vmatpush1.xpose.msra.mxu0 %v407
        %409 = vmatprep.subr.mxu0 0.0
        %410 = vmatpush2.xpose.msra.mxu0 0.0
        %411 = vmatprep.subr.mxu0 0.0
        %412 = vmatpush2.xpose.msra.mxu0 0.0
        %413 = vmatprep.subr.mxu0 0.0
        %414 = vmatpush2.xpose.msra.mxu0 0.0
        %415 = vmatprep.subr.mxu0 0.0
        %416 = vmatpush2.xpose.msra.mxu0 0.0
        %417 = vmatprep.subr.mxu0 0.0
        %418 = vmatpush2.xpose.msra.mxu0 0.0
        %419 = vmatprep.subr.mxu0 0.0
        %420 = vmatpush2.xpose.msra.mxu0 0.0
        %421 = vmatprep.subr.mxu0 0.0
        %422 = vmatpush2.xpose.msra.mxu0 0.0
        %423 = vmatprep.subr.mxu0 0.0
        %424 = vmatpush2.xpose.msra.mxu0 0.0
        %425 = vmatprep.subr.mxu0 0.0
        %426 = vmatpush2.xpose.msra.mxu0 0.0
        %427 = vmatprep.subr.mxu0 0.0
        %428 = vmatpush2.xpose.msra.mxu0 0.0
        %429 = vmatprep.subr.mxu0 0.0
        %430 = vmatpush2.xpose.msra.mxu0 0.0
        %431 = vmatprep.subr.mxu0 0.0
        %432 = vmatpush2.xpose.msra.mxu0 0.0
        %433 = vmatprep.subr.mxu0 0.0
        %434 = vmatpush2.xpose.msra.mxu0 0.0
        %435 = vmatprep.subr.mxu0 0.0
        %436 = vmatpush2.xpose.msra.mxu0 0.0
        %437 = vmatprep.subr.mxu0 0.0
        %438 = vmatpush2.xpose.msra.mxu0 0.0
        %439 = vmatprep.subr.mxu0 0.0
        %440 = vmatpush2.xpose.msra.mxu0 0.0
        %441 = vmatprep.mubr.f32.mxu0 0.0
        %v442 = vand.u32 %v278, 4294901760
        %v443 = vsub.f32 %v278, %v442
        %v444 = vand.u32 %v443, 4294901760
        %v445 = vsub.f32 %v443, %v444
        %v446 = vand.u32 %v445, 4294901760
        %447 = vmatmul.mubr.f32.gmra.mxu0 %v446
        %v448 = vpop.f32.mrf.mxu0
        %v449 = vadd.f32 0.0, %v448
        %v450 = vpop.f32.mrf.mxu0
        %451 = vmatprep.mubr.f32.mxu0 0.0
        %v452 = vand.u32 %v281, 4294901760
        %v453 = vsub.f32 %v281, %v452
        %v454 = vand.u32 %v453, 4294901760
        %v455 = vsub.f32 %v453, %v454
        %v456 = vand.u32 %v455, 4294901760
        %457 = vmatmul.mubr.f32.gmra.mxu0 %v456
        %v458 = vpop.f32.mrf.mxu0
        %v459 = vadd.f32 0.0, %v458
        %v460 = vpop.f32.mrf.mxu0
        %461 = vmatprep.mubr.f32.mxu0 0.0
        %v462 = vand.u32 %v284, 4294901760
        %v463 = vsub.f32 %v284, %v462
        %v464 = vand.u32 %v463, 4294901760
        %v465 = vsub.f32 %v463, %v464
        %v466 = vand.u32 %v465, 4294901760
        %467 = vmatmul.mubr.f32.gmra.mxu0 %v466
        %v468 = vpop.f32.mrf.mxu0
        %v469 = vadd.f32 0.0, %v468
        %v470 = vpop.f32.mrf.mxu0
        %471 = vmatprep.mubr.f32.mxu0 0.0
        %v472 = vand.u32 %v287, 4294901760
        %v473 = vsub.f32 %v287, %v472
        %v474 = vand.u32 %v473, 4294901760
        %v475 = vsub.f32 %v473, %v474
        %v476 = vand.u32 %v475, 4294901760
        %477 = vmatmul.mubr.f32.gmra.mxu0 %v476
        %v478 = vpop.f32.mrf.mxu0
        %v479 = vadd.f32 0.0, %v478
        %v480 = vpop.f32.mrf.mxu0
        %481 = vmatprep.mubr.f32.mxu0 0.0
        %v482 = vand.u32 %v290, 4294901760
        %v483 = vsub.f32 %v290, %v482
        %v484 = vand.u32 %v483, 4294901760
        %v485 = vsub.f32 %v483, %v484
        %v486 = vand.u32 %v485, 4294901760
        %487 = vmatmul.mubr.f32.gmra.mxu0 %v486
        %v488 = vpop.f32.mrf.mxu0
        %v489 = vadd.f32 0.0, %v488
        %v490 = vpop.f32.mrf.mxu0
        %491 = vmatprep.mubr.f32.mxu0 0.0
        %v492 = vand.u32 %v293, 4294901760
        %v493 = vsub.f32 %v293, %v492
        %v494 = vand.u32 %v493, 4294901760
        %v495 = vsub.f32 %v493, %v494
        %v496 = vand.u32 %v495, 4294901760
        %497 = vmatmul.mubr.f32.gmra.mxu0 %v496
        %v498 = vpop.f32.mrf.mxu0
        %v499 = vadd.f32 0.0, %v498
        %v500 = vpop.f32.mrf.mxu0
        %501 = vmatprep.mubr.f32.mxu0 0.0
        %v502 = vand.u32 %v296, 4294901760
        %v503 = vsub.f32 %v296, %v502
        %v504 = vand.u32 %v503, 4294901760
        %v505 = vsub.f32 %v503, %v504
        %v506 = vand.u32 %v505, 4294901760
        %507 = vmatmul.mubr.f32.gmra.mxu0 %v506
        %v508 = vpop.f32.mrf.mxu0
        %v509 = vadd.f32 0.0, %v508
        %v510 = vpop.f32.mrf.mxu0
        %511 = vmatprep.mubr.f32.mxu0 0.0
        %v512 = vand.u32 %v299, 4294901760
        %v513 = vsub.f32 %v299, %v512
        %v514 = vand.u32 %v513, 4294901760
        %v515 = vsub.f32 %v513, %v514
        %v516 = vand.u32 %v515, 4294901760
        %517 = vmatmul.mubr.f32.gmra.mxu0 %v516
        %v518 = vpop.f32.mrf.mxu0
        %v519 = vadd.f32 0.0, %v518
        %v520 = vpop.f32.mrf.mxu0
        %521 = vmatprep.mubr.f32.mxu0 0.0
        %v522 = vand.u32 %v302, 4294901760
        %v523 = vsub.f32 %v302, %v522
        %v524 = vand.u32 %v523, 4294901760
        %v525 = vsub.f32 %v523, %v524
        %v526 = vand.u32 %v525, 4294901760
        %527 = vmatmul.mubr.f32.gmra.mxu0 %v526
        %v528 = vpop.f32.mrf.mxu0
        %v529 = vadd.f32 0.0, %v528
        %v530 = vpop.f32.mrf.mxu0
        %531 = vmatprep.mubr.f32.mxu0 0.0
        %v532 = vand.u32 %v305, 4294901760
        %v533 = vsub.f32 %v305, %v532
        %v534 = vand.u32 %v533, 4294901760
        %v535 = vsub.f32 %v533, %v534
        %v536 = vand.u32 %v535, 4294901760
        %537 = vmatmul.mubr.f32.gmra.mxu0 %v536
        %v538 = vpop.f32.mrf.mxu0
        %v539 = vadd.f32 0.0, %v538
        %v540 = vpop.f32.mrf.mxu0
        %541 = vmatprep.mubr.f32.mxu0 0.0
        %v542 = vand.u32 %v308, 4294901760
        %v543 = vsub.f32 %v308, %v542
        %v544 = vand.u32 %v543, 4294901760
        %v545 = vsub.f32 %v543, %v544
        %v546 = vand.u32 %v545, 4294901760
        %547 = vmatmul.mubr.f32.gmra.mxu0 %v546
        %v548 = vpop.f32.mrf.mxu0
        %v549 = vadd.f32 0.0, %v548
        %v550 = vpop.f32.mrf.mxu0
        %551 = vmatprep.mubr.f32.mxu0 0.0
        %v552 = vand.u32 %v311, 4294901760
        %v553 = vsub.f32 %v311, %v552
        %v554 = vand.u32 %v553, 4294901760
        %v555 = vsub.f32 %v553, %v554
        %v556 = vand.u32 %v555, 4294901760
        %557 = vmatmul.mubr.f32.gmra.mxu0 %v556
        %v558 = vpop.f32.mrf.mxu0
        %v559 = vadd.f32 0.0, %v558
        %v560 = vpop.f32.mrf.mxu0
        %561 = vmatprep.mubr.f32.mxu0 0.0
        %v562 = vand.u32 %v314, 4294901760
        %v563 = vsub.f32 %v314, %v562
        %v564 = vand.u32 %v563, 4294901760
        %v565 = vsub.f32 %v563, %v564
        %v566 = vand.u32 %v565, 4294901760
        %567 = vmatmul.mubr.f32.gmra.mxu0 %v566
        %v568 = vpop.f32.mrf.mxu0
        %v569 = vadd.f32 0.0, %v568
        %v570 = vpop.f32.mrf.mxu0
        %571 = vmatprep.mubr.f32.mxu0 0.0
        %v572 = vand.u32 %v317, 4294901760
        %v573 = vsub.f32 %v317, %v572
        %v574 = vand.u32 %v573, 4294901760
        %v575 = vsub.f32 %v573, %v574
        %v576 = vand.u32 %v575, 4294901760
        %577 = vmatmul.mubr.f32.gmra.mxu0 %v576
        %v578 = vpop.f32.mrf.mxu0
        %v579 = vadd.f32 0.0, %v578
        %v580 = vpop.f32.mrf.mxu0
        %581 = vmatprep.mubr.f32.mxu0 0.0
        %v582 = vand.u32 %v320, 4294901760
        %v583 = vsub.f32 %v320, %v582
        %v584 = vand.u32 %v583, 4294901760
        %v585 = vsub.f32 %v583, %v584
        %v586 = vand.u32 %v585, 4294901760
        %587 = vmatmul.mubr.f32.gmra.mxu0 %v586
        %v588 = vpop.f32.mrf.mxu0
        %v589 = vadd.f32 0.0, %v588
        %v590 = vpop.f32.mrf.mxu0
        %591 = vmatprep.mubr.f32.mxu0 0.0
        %v592 = vand.u32 %v323, 4294901760
        %v593 = vsub.f32 %v323, %v592
        %v594 = vand.u32 %v593, 4294901760
        %v595 = vsub.f32 %v593, %v594
        %v596 = vand.u32 %v595, 4294901760
        %597 = vmatmul.mubr.f32.gmra.mxu0 %v596
        %v598 = vpop.f32.mrf.mxu0
        %v599 = vadd.f32 0.0, %v598
        %v600 = vpop.f32.mrf.mxu0
        %601 = vmatprep.mubr.f32.mxu0 0.0
        %v602 = vand.u32 %v326, 4294901760
        %v603 = vsub.f32 %v326, %v602
        %v604 = vand.u32 %v603, 4294901760
        %v605 = vsub.f32 %v603, %v604
        %v606 = vand.u32 %v605, 4294901760
        %607 = vmatmul.mubr.f32.gmra.mxu0 %v606
        %v608 = vpop.f32.mrf.mxu0
        %v609 = vadd.f32 0.0, %v608
        %v610 = vpop.f32.mrf.mxu0
        %611 = vmatprep.mubr.f32.mxu0 0.0
        %v612 = vand.u32 %v329, 4294901760
        %v613 = vsub.f32 %v329, %v612
        %v614 = vand.u32 %v613, 4294901760
        %v615 = vsub.f32 %v613, %v614
        %v616 = vand.u32 %v615, 4294901760
        %617 = vmatmul.mubr.f32.gmra.mxu0 %v616
        %v618 = vpop.f32.mrf.mxu0
        %v619 = vadd.f32 0.0, %v618
        %v620 = vpop.f32.mrf.mxu0
        %621 = vmatprep.mubr.f32.mxu0 0.0
        %v622 = vand.u32 %v332, 4294901760
        %v623 = vsub.f32 %v332, %v622
        %v624 = vand.u32 %v623, 4294901760
        %v625 = vsub.f32 %v623, %v624
        %v626 = vand.u32 %v625, 4294901760
        %627 = vmatmul.mubr.f32.gmra.mxu0 %v626
        %v628 = vpop.f32.mrf.mxu0
        %v629 = vadd.f32 0.0, %v628
        %v630 = vpop.f32.mrf.mxu0
        %631 = vmatprep.mubr.f32.mxu0 0.0
        %v632 = vand.u32 %v335, 4294901760
        %v633 = vsub.f32 %v335, %v632
        %v634 = vand.u32 %v633, 4294901760
        %v635 = vsub.f32 %v633, %v634
        %v636 = vand.u32 %v635, 4294901760
        %637 = vmatmul.mubr.f32.gmra.mxu0 %v636
        %v638 = vpop.f32.mrf.mxu0
        %v639 = vadd.f32 0.0, %v638
        %v640 = vpop.f32.mrf.mxu0
        %641 = vmatprep.mubr.f32.mxu0 0.0
        %v642 = vand.u32 %v338, 4294901760
        %v643 = vsub.f32 %v338, %v642
        %v644 = vand.u32 %v643, 4294901760
        %v645 = vsub.f32 %v643, %v644
        %v646 = vand.u32 %v645, 4294901760
        %647 = vmatmul.mubr.f32.gmra.mxu0 %v646
        %v648 = vpop.f32.mrf.mxu0
        %v649 = vadd.f32 0.0, %v648
        %v650 = vpop.f32.mrf.mxu0
        %651 = vmatprep.mubr.f32.mxu0 0.0
        %v652 = vand.u32 %v341, 4294901760
        %v653 = vsub.f32 %v341, %v652
        %v654 = vand.u32 %v653, 4294901760
        %v655 = vsub.f32 %v653, %v654
        %v656 = vand.u32 %v655, 4294901760
        %657 = vmatmul.mubr.f32.gmra.mxu0 %v656
        %v658 = vpop.f32.mrf.mxu0
        %v659 = vadd.f32 0.0, %v658
        %v660 = vpop.f32.mrf.mxu0
        %661 = vmatprep.mubr.f32.mxu0 0.0
        %v662 = vand.u32 %v344, 4294901760
        %v663 = vsub.f32 %v344, %v662
        %v664 = vand.u32 %v663, 4294901760
        %v665 = vsub.f32 %v663, %v664
        %v666 = vand.u32 %v665, 4294901760
        %667 = vmatmul.mubr.f32.gmra.mxu0 %v666
        %v668 = vpop.f32.mrf.mxu0
        %v669 = vadd.f32 0.0, %v668
        %v670 = vpop.f32.mrf.mxu0
        %671 = vmatprep.mubr.f32.mxu0 0.0
        %v672 = vand.u32 %v347, 4294901760
        %v673 = vsub.f32 %v347, %v672
        %v674 = vand.u32 %v673, 4294901760
        %v675 = vsub.f32 %v673, %v674
        %v676 = vand.u32 %v675, 4294901760
        %677 = vmatmul.mubr.f32.gmra.mxu0 %v676
        %v678 = vpop.f32.mrf.mxu0
        %v679 = vadd.f32 0.0, %v678
        %v680 = vpop.f32.mrf.mxu0
        %681 = vmatprep.mubr.f32.mxu0 0.0
        %v682 = vand.u32 %v350, 4294901760
        %v683 = vsub.f32 %v350, %v682
        %v684 = vand.u32 %v683, 4294901760
        %v685 = vsub.f32 %v683, %v684
        %v686 = vand.u32 %v685, 4294901760
        %687 = vmatmul.mubr.f32.gmra.mxu0 %v686
        %v688 = vpop.f32.mrf.mxu0
        %v689 = vadd.f32 0.0, %v688
        %v690 = vpop.f32.mrf.mxu0
        %691 = vmatprep.mubr.f32.mxu0 0.0
        %v692 = vand.u32 %v353, 4294901760
        %v693 = vsub.f32 %v353, %v692
        %v694 = vand.u32 %v693, 4294901760
        %v695 = vsub.f32 %v693, %v694
        %v696 = vand.u32 %v695, 4294901760
        %697 = vmatmul.mubr.f32.gmra.mxu0 %v696
        %v698 = vpop.f32.mrf.mxu0
        %v699 = vadd.f32 0.0, %v698
        %v700 = vpop.f32.mrf.mxu0
        %701 = vmatprep.mubr.f32.mxu0 0.0
        %v702 = vand.u32 %v356, 4294901760
        %v703 = vsub.f32 %v356, %v702
        %v704 = vand.u32 %v703, 4294901760
        %v705 = vsub.f32 %v703, %v704
        %v706 = vand.u32 %v705, 4294901760
        %707 = vmatmul.mubr.f32.gmra.mxu0 %v706
        %v708 = vpop.f32.mrf.mxu0
        %v709 = vadd.f32 0.0, %v708
        %v710 = vpop.f32.mrf.mxu0
        %711 = vmatprep.mubr.f32.mxu0 0.0
        %v712 = vand.u32 %v359, 4294901760
        %v713 = vsub.f32 %v359, %v712
        %v714 = vand.u32 %v713, 4294901760
        %v715 = vsub.f32 %v713, %v714
        %v716 = vand.u32 %v715, 4294901760
        %717 = vmatmul.mubr.f32.gmra.mxu0 %v716
        %v718 = vpop.f32.mrf.mxu0
        %v719 = vadd.f32 0.0, %v718
        %v720 = vpop.f32.mrf.mxu0
        %721 = vmatprep.mubr.f32.mxu0 0.0
        %v722 = vand.u32 %v362, 4294901760
        %v723 = vsub.f32 %v362, %v722
        %v724 = vand.u32 %v723, 4294901760
        %v725 = vsub.f32 %v723, %v724
        %v726 = vand.u32 %v725, 4294901760
        %727 = vmatmul.mubr.f32.gmra.mxu0 %v726
        %v728 = vpop.f32.mrf.mxu0
        %v729 = vadd.f32 0.0, %v728
        %v730 = vpop.f32.mrf.mxu0
        %731 = vmatprep.mubr.f32.mxu0 0.0
        %v732 = vand.u32 %v365, 4294901760
        %v733 = vsub.f32 %v365, %v732
        %v734 = vand.u32 %v733, 4294901760
        %v735 = vsub.f32 %v733, %v734
        %v736 = vand.u32 %v735, 4294901760
        %737 = vmatmul.mubr.f32.gmra.mxu0 %v736
        %v738 = vpop.f32.mrf.mxu0
        %v739 = vadd.f32 0.0, %v738
        %v740 = vpop.f32.mrf.mxu0
        %741 = vmatprep.mubr.f32.mxu0 0.0
        %v742 = vand.u32 %v368, 4294901760
        %v743 = vsub.f32 %v368, %v742
        %v744 = vand.u32 %v743, 4294901760
        %v745 = vsub.f32 %v743, %v744
        %v746 = vand.u32 %v745, 4294901760
        %747 = vmatmul.mubr.f32.gmra.mxu0 %v746
        %v748 = vpop.f32.mrf.mxu0
        %v749 = vadd.f32 0.0, %v748
        %v750 = vpop.f32.mrf.mxu0
        %751 = vmatprep.mubr.f32.mxu0 0.0
        %v752 = vand.u32 %v371, 4294901760
        %v753 = vsub.f32 %v371, %v752
        %v754 = vand.u32 %v753, 4294901760
        %v755 = vsub.f32 %v753, %v754
        %v756 = vand.u32 %v755, 4294901760
        %757 = vmatmul.mubr.f32.gmra.mxu0 %v756
        %v758 = vpop.f32.mrf.mxu0
        %v759 = vadd.f32 0.0, %v758
        %v760 = vpop.f32.mrf.mxu0
        %761 = vdwg.mxu0
        %762 = vmatprep.subr.mxu0 0.0
        %763 = vmatpush1.xpose.msra.mxu0 0.0
        %764 = vmatprep.subr.mxu0 0.0
        %765 = vmatpush1.xpose.msra.mxu0 0.0
        %766 = vmatprep.subr.mxu0 0.0
        %767 = vmatpush1.xpose.msra.mxu0 0.0
        %768 = vmatprep.subr.mxu0 0.0
        %769 = vmatpush1.xpose.msra.mxu0 0.0
        %770 = vmatprep.subr.mxu0 0.0
        %771 = vmatpush1.xpose.msra.mxu0 0.0
        %772 = vmatprep.subr.mxu0 0.0
        %773 = vmatpush1.xpose.msra.mxu0 0.0
        %774 = vmatprep.subr.mxu0 0.0
        %775 = vmatpush1.xpose.msra.mxu0 0.0
        %776 = vmatprep.subr.mxu0 0.0
        %777 = vmatpush1.xpose.msra.mxu0 0.0
        %778 = vmatprep.subr.mxu0 0.0
        %779 = vmatpush1.xpose.msra.mxu0 0.0
        %780 = vmatprep.subr.mxu0 0.0
        %781 = vmatpush1.xpose.msra.mxu0 0.0
        %782 = vmatprep.subr.mxu0 0.0
        %783 = vmatpush1.xpose.msra.mxu0 0.0
        %784 = vmatprep.subr.mxu0 0.0
        %785 = vmatpush1.xpose.msra.mxu0 0.0
        %786 = vmatprep.subr.mxu0 0.0
        %787 = vmatpush1.xpose.msra.mxu0 0.0
        %788 = vmatprep.subr.mxu0 0.0
        %789 = vmatpush1.xpose.msra.mxu0 0.0
        %790 = vmatprep.subr.mxu0 0.0
        %791 = vmatpush1.xpose.msra.mxu0 0.0
        %792 = vmatprep.subr.mxu0 0.0
        %v793 = vand.u32 %v374, 4294901760
        %v794 = vsub.f32 %v374, %v793
        %v795 = vand.u32 %v794, 4294901760
        %v796 = vsub.f32 %v794, %v795
        %v797 = vand.u32 %v796, 4294901760
        %798 = vmatpush1.xpose.msra.mxu0 %v797
        %799 = vmatprep.subr.mxu0 0.0
        %800 = vmatpush2.xpose.msra.mxu0 0.0
        %801 = vmatprep.subr.mxu0 0.0
        %802 = vmatpush2.xpose.msra.mxu0 0.0
        %803 = vmatprep.subr.mxu0 0.0
        %804 = vmatpush2.xpose.msra.mxu0 0.0
        %805 = vmatprep.subr.mxu0 0.0
        %806 = vmatpush2.xpose.msra.mxu0 0.0
        %807 = vmatprep.subr.mxu0 0.0
        %808 = vmatpush2.xpose.msra.mxu0 0.0
        %809 = vmatprep.subr.mxu0 0.0
        %810 = vmatpush2.xpose.msra.mxu0 0.0
        %811 = vmatprep.subr.mxu0 0.0
        %812 = vmatpush2.xpose.msra.mxu0 0.0
        %813 = vmatprep.subr.mxu0 0.0
        %814 = vmatpush2.xpose.msra.mxu0 0.0
        %815 = vmatprep.subr.mxu0 0.0
        %816 = vmatpush2.xpose.msra.mxu0 0.0
        %817 = vmatprep.subr.mxu0 0.0
        %818 = vmatpush2.xpose.msra.mxu0 0.0
        %819 = vmatprep.subr.mxu0 0.0
        %820 = vmatpush2.xpose.msra.mxu0 0.0
        %821 = vmatprep.subr.mxu0 0.0
        %822 = vmatpush2.xpose.msra.mxu0 0.0
        %823 = vmatprep.subr.mxu0 0.0
        %824 = vmatpush2.xpose.msra.mxu0 0.0
        %825 = vmatprep.subr.mxu0 0.0
        %826 = vmatpush2.xpose.msra.mxu0 0.0
        %827 = vmatprep.subr.mxu0 0.0
        %828 = vmatpush2.xpose.msra.mxu0 0.0
        %829 = vmatprep.subr.mxu0 0.0
        %830 = vmatpush2.xpose.msra.mxu0 0.0
        %831 = vmatprep.mubr.f32.mxu0 0.0
        %v832 = vand.u32 %v278, 4294901760
        %833 = vmatmul.mubr.f32.gmra.mxu0 %v832
        %v834 = vpop.f32.mrf.mxu0
        %v835 = vadd.f32 %v449, %v834
        %v836 = vpop.f32.mrf.mxu0
        %837 = vmatprep.mubr.f32.mxu0 0.0
        %v838 = vand.u32 %v281, 4294901760
        %839 = vmatmul.mubr.f32.gmra.mxu0 %v838
        %v840 = vpop.f32.mrf.mxu0
        %v841 = vadd.f32 %v459, %v840
        %v842 = vpop.f32.mrf.mxu0
        %843 = vmatprep.mubr.f32.mxu0 0.0
        %v844 = vand.u32 %v284, 4294901760
        %845 = vmatmul.mubr.f32.gmra.mxu0 %v844
        %v846 = vpop.f32.mrf.mxu0
        %v847 = vadd.f32 %v469, %v846
        %v848 = vpop.f32.mrf.mxu0
        %849 = vmatprep.mubr.f32.mxu0 0.0
        %v850 = vand.u32 %v287, 4294901760
        %851 = vmatmul.mubr.f32.gmra.mxu0 %v850
        %v852 = vpop.f32.mrf.mxu0
        %v853 = vadd.f32 %v479, %v852
        %v854 = vpop.f32.mrf.mxu0
        %855 = vmatprep.mubr.f32.mxu0 0.0
        %v856 = vand.u32 %v290, 4294901760
        %857 = vmatmul.mubr.f32.gmra.mxu0 %v856
        %v858 = vpop.f32.mrf.mxu0
        %v859 = vadd.f32 %v489, %v858
        %v860 = vpop.f32.mrf.mxu0
        %861 = vmatprep.mubr.f32.mxu0 0.0
        %v862 = vand.u32 %v293, 4294901760
        %863 = vmatmul.mubr.f32.gmra.mxu0 %v862
        %v864 = vpop.f32.mrf.mxu0
        %v865 = vadd.f32 %v499, %v864
        %v866 = vpop.f32.mrf.mxu0
        %867 = vmatprep.mubr.f32.mxu0 0.0
        %v868 = vand.u32 %v296, 4294901760
        %869 = vmatmul.mubr.f32.gmra.mxu0 %v868
        %v870 = vpop.f32.mrf.mxu0
        %v871 = vadd.f32 %v509, %v870
        %v872 = vpop.f32.mrf.mxu0
        %873 = vmatprep.mubr.f32.mxu0 0.0
        %v874 = vand.u32 %v299, 4294901760
        %875 = vmatmul.mubr.f32.gmra.mxu0 %v874
        %v876 = vpop.f32.mrf.mxu0
        %v877 = vadd.f32 %v519, %v876
        %v878 = vpop.f32.mrf.mxu0
        %879 = vmatprep.mubr.f32.mxu0 0.0
        %v880 = vand.u32 %v302, 4294901760
        %881 = vmatmul.mubr.f32.gmra.mxu0 %v880
        %v882 = vpop.f32.mrf.mxu0
        %v883 = vadd.f32 %v529, %v882
        %v884 = vpop.f32.mrf.mxu0
        %885 = vmatprep.mubr.f32.mxu0 0.0
        %v886 = vand.u32 %v305, 4294901760
        %887 = vmatmul.mubr.f32.gmra.mxu0 %v886
        %v888 = vpop.f32.mrf.mxu0
        %v889 = vadd.f32 %v539, %v888
        %v890 = vpop.f32.mrf.mxu0
        %891 = vmatprep.mubr.f32.mxu0 0.0
        %v892 = vand.u32 %v308, 4294901760
        %893 = vmatmul.mubr.f32.gmra.mxu0 %v892
        %v894 = vpop.f32.mrf.mxu0
        %v895 = vadd.f32 %v549, %v894
        %v896 = vpop.f32.mrf.mxu0
        %897 = vmatprep.mubr.f32.mxu0 0.0
        %v898 = vand.u32 %v311, 4294901760
        %899 = vmatmul.mubr.f32.gmra.mxu0 %v898
        %v900 = vpop.f32.mrf.mxu0
        %v901 = vadd.f32 %v559, %v900
        %v902 = vpop.f32.mrf.mxu0
        %903 = vmatprep.mubr.f32.mxu0 0.0
        %v904 = vand.u32 %v314, 4294901760
        %905 = vmatmul.mubr.f32.gmra.mxu0 %v904
        %v906 = vpop.f32.mrf.mxu0
        %v907 = vadd.f32 %v569, %v906
        %v908 = vpop.f32.mrf.mxu0
        %909 = vmatprep.mubr.f32.mxu0 0.0
        %v910 = vand.u32 %v317, 4294901760
        %911 = vmatmul.mubr.f32.gmra.mxu0 %v910
        %v912 = vpop.f32.mrf.mxu0
        %v913 = vadd.f32 %v579, %v912
        %v914 = vpop.f32.mrf.mxu0
        %915 = vmatprep.mubr.f32.mxu0 0.0
        %v916 = vand.u32 %v320, 4294901760
        %917 = vmatmul.mubr.f32.gmra.mxu0 %v916
        %v918 = vpop.f32.mrf.mxu0
        %v919 = vadd.f32 %v589, %v918
        %v920 = vpop.f32.mrf.mxu0
        %921 = vmatprep.mubr.f32.mxu0 0.0
        %v922 = vand.u32 %v323, 4294901760
        %923 = vmatmul.mubr.f32.gmra.mxu0 %v922
        %v924 = vpop.f32.mrf.mxu0
        %v925 = vadd.f32 %v599, %v924
        %v926 = vpop.f32.mrf.mxu0
        %927 = vmatprep.mubr.f32.mxu0 0.0
        %v928 = vand.u32 %v326, 4294901760
        %929 = vmatmul.mubr.f32.gmra.mxu0 %v928
        %v930 = vpop.f32.mrf.mxu0
        %v931 = vadd.f32 %v609, %v930
        %v932 = vpop.f32.mrf.mxu0
        %933 = vmatprep.mubr.f32.mxu0 0.0
        %v934 = vand.u32 %v329, 4294901760
        %935 = vmatmul.mubr.f32.gmra.mxu0 %v934
        %v936 = vpop.f32.mrf.mxu0
        %v937 = vadd.f32 %v619, %v936
        %v938 = vpop.f32.mrf.mxu0
        %939 = vmatprep.mubr.f32.mxu0 0.0
        %v940 = vand.u32 %v332, 4294901760
        %941 = vmatmul.mubr.f32.gmra.mxu0 %v940
        %v942 = vpop.f32.mrf.mxu0
        %v943 = vadd.f32 %v629, %v942
        %v944 = vpop.f32.mrf.mxu0
        %945 = vmatprep.mubr.f32.mxu0 0.0
        %v946 = vand.u32 %v335, 4294901760
        %947 = vmatmul.mubr.f32.gmra.mxu0 %v946
        %v948 = vpop.f32.mrf.mxu0
        %v949 = vadd.f32 %v639, %v948
        %v950 = vpop.f32.mrf.mxu0
        %951 = vmatprep.mubr.f32.mxu0 0.0
        %v952 = vand.u32 %v338, 4294901760
        %953 = vmatmul.mubr.f32.gmra.mxu0 %v952
        %v954 = vpop.f32.mrf.mxu0
        %v955 = vadd.f32 %v649, %v954
        %v956 = vpop.f32.mrf.mxu0
        %957 = vmatprep.mubr.f32.mxu0 0.0
        %v958 = vand.u32 %v341, 4294901760
        %959 = vmatmul.mubr.f32.gmra.mxu0 %v958
        %v960 = vpop.f32.mrf.mxu0
        %v961 = vadd.f32 %v659, %v960
        %v962 = vpop.f32.mrf.mxu0
        %963 = vmatprep.mubr.f32.mxu0 0.0
        %v964 = vand.u32 %v344, 4294901760
        %965 = vmatmul.mubr.f32.gmra.mxu0 %v964
        %v966 = vpop.f32.mrf.mxu0
        %v967 = vadd.f32 %v669, %v966
        %v968 = vpop.f32.mrf.mxu0
        %969 = vmatprep.mubr.f32.mxu0 0.0
        %v970 = vand.u32 %v347, 4294901760
        %971 = vmatmul.mubr.f32.gmra.mxu0 %v970
        %v972 = vpop.f32.mrf.mxu0
        %v973 = vadd.f32 %v679, %v972
        %v974 = vpop.f32.mrf.mxu0
        %975 = vmatprep.mubr.f32.mxu0 0.0
        %v976 = vand.u32 %v350, 4294901760
        %977 = vmatmul.mubr.f32.gmra.mxu0 %v976
        %v978 = vpop.f32.mrf.mxu0
        %v979 = vadd.f32 %v689, %v978
        %v980 = vpop.f32.mrf.mxu0
        %981 = vmatprep.mubr.f32.mxu0 0.0
        %v982 = vand.u32 %v353, 4294901760
        %983 = vmatmul.mubr.f32.gmra.mxu0 %v982
        %v984 = vpop.f32.mrf.mxu0
        %v985 = vadd.f32 %v699, %v984
        %v986 = vpop.f32.mrf.mxu0
        %987 = vmatprep.mubr.f32.mxu0 0.0
        %v988 = vand.u32 %v356, 4294901760
        %989 = vmatmul.mubr.f32.gmra.mxu0 %v988
        %v990 = vpop.f32.mrf.mxu0
        %v991 = vadd.f32 %v709, %v990
        %v992 = vpop.f32.mrf.mxu0
        %993 = vmatprep.mubr.f32.mxu0 0.0
        %v994 = vand.u32 %v359, 4294901760
        %995 = vmatmul.mubr.f32.gmra.mxu0 %v994
        %v996 = vpop.f32.mrf.mxu0
        %v997 = vadd.f32 %v719, %v996
        %v998 = vpop.f32.mrf.mxu0
        %999 = vmatprep.mubr.f32.mxu0 0.0
        %v1000 = vand.u32 %v362, 4294901760
        %1001 = vmatmul.mubr.f32.gmra.mxu0 %v1000
        %v1002 = vpop.f32.mrf.mxu0
        %v1003 = vadd.f32 %v729, %v1002
        %v1004 = vpop.f32.mrf.mxu0
        %1005 = vmatprep.mubr.f32.mxu0 0.0
        %v1006 = vand.u32 %v365, 4294901760
        %1007 = vmatmul.mubr.f32.gmra.mxu0 %v1006
        %v1008 = vpop.f32.mrf.mxu0
        %v1009 = vadd.f32 %v739, %v1008
        %v1010 = vpop.f32.mrf.mxu0
        %1011 = vmatprep.mubr.f32.mxu0 0.0
        %v1012 = vand.u32 %v368, 4294901760
        %1013 = vmatmul.mubr.f32.gmra.mxu0 %v1012
        %v1014 = vpop.f32.mrf.mxu0
        %v1015 = vadd.f32 %v749, %v1014
        %v1016 = vpop.f32.mrf.mxu0
        %1017 = vmatprep.mubr.f32.mxu0 0.0
        %v1018 = vand.u32 %v371, 4294901760
        %1019 = vmatmul.mubr.f32.gmra.mxu0 %v1018
        %v1020 = vpop.f32.mrf.mxu0
        %v1021 = vadd.f32 %v759, %v1020
        %v1022 = vpop.f32.mrf.mxu0
        %1023 = vdwg.mxu0
        %1024 = vmatprep.subr.mxu0 0.0
        %1025 = vmatpush1.xpose.msra.mxu0 0.0
        %1026 = vmatprep.subr.mxu0 0.0
        %1027 = vmatpush1.xpose.msra.mxu0 0.0
        %1028 = vmatprep.subr.mxu0 0.0
        %1029 = vmatpush1.xpose.msra.mxu0 0.0
        %1030 = vmatprep.subr.mxu0 0.0
        %1031 = vmatpush1.xpose.msra.mxu0 0.0
        %1032 = vmatprep.subr.mxu0 0.0
        %1033 = vmatpush1.xpose.msra.mxu0 0.0
        %1034 = vmatprep.subr.mxu0 0.0
        %1035 = vmatpush1.xpose.msra.mxu0 0.0
        %1036 = vmatprep.subr.mxu0 0.0
        %1037 = vmatpush1.xpose.msra.mxu0 0.0
        %1038 = vmatprep.subr.mxu0 0.0
        %1039 = vmatpush1.xpose.msra.mxu0 0.0
        %1040 = vmatprep.subr.mxu0 0.0
        %1041 = vmatpush1.xpose.msra.mxu0 0.0
        %1042 = vmatprep.subr.mxu0 0.0
        %1043 = vmatpush1.xpose.msra.mxu0 0.0
        %1044 = vmatprep.subr.mxu0 0.0
        %1045 = vmatpush1.xpose.msra.mxu0 0.0
        %1046 = vmatprep.subr.mxu0 0.0
        %1047 = vmatpush1.xpose.msra.mxu0 0.0
        %1048 = vmatprep.subr.mxu0 0.0
        %1049 = vmatpush1.xpose.msra.mxu0 0.0
        %1050 = vmatprep.subr.mxu0 0.0
        %1051 = vmatpush1.xpose.msra.mxu0 0.0
        %1052 = vmatprep.subr.mxu0 0.0
        %1053 = vmatpush1.xpose.msra.mxu0 0.0
        %1054 = vmatprep.subr.mxu0 0.0
        %v1055 = vand.u32 %v374, 4294901760
        %v1056 = vsub.f32 %v374, %v1055
        %1057 = vmatpush1.xpose.msra.mxu0 %v1056
        %1058 = vmatprep.subr.mxu0 0.0
        %1059 = vmatpush2.xpose.msra.mxu0 0.0
        %1060 = vmatprep.subr.mxu0 0.0
        %1061 = vmatpush2.xpose.msra.mxu0 0.0
        %1062 = vmatprep.subr.mxu0 0.0
        %1063 = vmatpush2.xpose.msra.mxu0 0.0
        %1064 = vmatprep.subr.mxu0 0.0
        %1065 = vmatpush2.xpose.msra.mxu0 0.0
        %1066 = vmatprep.subr.mxu0 0.0
        %1067 = vmatpush2.xpose.msra.mxu0 0.0
        %1068 = vmatprep.subr.mxu0 0.0
        %1069 = vmatpush2.xpose.msra.mxu0 0.0
        %1070 = vmatprep.subr.mxu0 0.0
        %1071 = vmatpush2.xpose.msra.mxu0 0.0
        %1072 = vmatprep.subr.mxu0 0.0
        %1073 = vmatpush2.xpose.msra.mxu0 0.0
        %1074 = vmatprep.subr.mxu0 0.0
        %1075 = vmatpush2.xpose.msra.mxu0 0.0
        %1076 = vmatprep.subr.mxu0 0.0
        %1077 = vmatpush2.xpose.msra.mxu0 0.0
        %1078 = vmatprep.subr.mxu0 0.0
        %1079 = vmatpush2.xpose.msra.mxu0 0.0
        %1080 = vmatprep.subr.mxu0 0.0
        %1081 = vmatpush2.xpose.msra.mxu0 0.0
        %1082 = vmatprep.subr.mxu0 0.0
        %1083 = vmatpush2.xpose.msra.mxu0 0.0
        %1084 = vmatprep.subr.mxu0 0.0
        %1085 = vmatpush2.xpose.msra.mxu0 0.0
        %1086 = vmatprep.subr.mxu0 0.0
        %1087 = vmatpush2.xpose.msra.mxu0 0.0
        %1088 = vmatprep.subr.mxu0 0.0
        %1089 = vmatpush2.xpose.msra.mxu0 0.0
        %1090 = vmatprep.mubr.f32.mxu0 0.0
        %v1091 = vand.u32 %v278, 4294901760
        %v1092 = vsub.f32 %v278, %v1091
        %1093 = vmatmul.mubr.f32.gmra.mxu0 %v1092
        %v1094 = vpop.f32.mrf.mxu0
        %v1095 = vadd.f32 %v835, %v1094
        %v1096 = vpop.f32.mrf.mxu0
        %1097 = vmatprep.mubr.f32.mxu0 0.0
        %v1098 = vand.u32 %v281, 4294901760
        %v1099 = vsub.f32 %v281, %v1098
        %1100 = vmatmul.mubr.f32.gmra.mxu0 %v1099
        %v1101 = vpop.f32.mrf.mxu0
        %v1102 = vadd.f32 %v841, %v1101
        %v1103 = vpop.f32.mrf.mxu0
        %1104 = vmatprep.mubr.f32.mxu0 0.0
        %v1105 = vand.u32 %v284, 4294901760
        %v1106 = vsub.f32 %v284, %v1105
        %1107 = vmatmul.mubr.f32.gmra.mxu0 %v1106
        %v1108 = vpop.f32.mrf.mxu0
        %v1109 = vadd.f32 %v847, %v1108
        %v1110 = vpop.f32.mrf.mxu0
        %1111 = vmatprep.mubr.f32.mxu0 0.0
        %v1112 = vand.u32 %v287, 4294901760
        %v1113 = vsub.f32 %v287, %v1112
        %1114 = vmatmul.mubr.f32.gmra.mxu0 %v1113
        %v1115 = vpop.f32.mrf.mxu0
        %v1116 = vadd.f32 %v853, %v1115
        %v1117 = vpop.f32.mrf.mxu0
        %1118 = vmatprep.mubr.f32.mxu0 0.0
        %v1119 = vand.u32 %v290, 4294901760
        %v1120 = vsub.f32 %v290, %v1119
        %1121 = vmatmul.mubr.f32.gmra.mxu0 %v1120
        %v1122 = vpop.f32.mrf.mxu0
        %v1123 = vadd.f32 %v859, %v1122
        %v1124 = vpop.f32.mrf.mxu0
        %1125 = vmatprep.mubr.f32.mxu0 0.0
        %v1126 = vand.u32 %v293, 4294901760
        %v1127 = vsub.f32 %v293, %v1126
        %1128 = vmatmul.mubr.f32.gmra.mxu0 %v1127
        %v1129 = vpop.f32.mrf.mxu0
        %v1130 = vadd.f32 %v865, %v1129
        %v1131 = vpop.f32.mrf.mxu0
        %1132 = vmatprep.mubr.f32.mxu0 0.0
        %v1133 = vand.u32 %v296, 4294901760
        %v1134 = vsub.f32 %v296, %v1133
        %1135 = vmatmul.mubr.f32.gmra.mxu0 %v1134
        %v1136 = vpop.f32.mrf.mxu0
        %v1137 = vadd.f32 %v871, %v1136
        %v1138 = vpop.f32.mrf.mxu0
        %1139 = vmatprep.mubr.f32.mxu0 0.0
        %v1140 = vand.u32 %v299, 4294901760
        %v1141 = vsub.f32 %v299, %v1140
        %1142 = vmatmul.mubr.f32.gmra.mxu0 %v1141
        %v1143 = vpop.f32.mrf.mxu0
        %v1144 = vadd.f32 %v877, %v1143
        %v1145 = vpop.f32.mrf.mxu0
        %1146 = vmatprep.mubr.f32.mxu0 0.0
        %v1147 = vand.u32 %v302, 4294901760
        %v1148 = vsub.f32 %v302, %v1147
        %1149 = vmatmul.mubr.f32.gmra.mxu0 %v1148
        %v1150 = vpop.f32.mrf.mxu0
        %v1151 = vadd.f32 %v883, %v1150
        %v1152 = vpop.f32.mrf.mxu0
        %1153 = vmatprep.mubr.f32.mxu0 0.0
        %v1154 = vand.u32 %v305, 4294901760
        %v1155 = vsub.f32 %v305, %v1154
        %1156 = vmatmul.mubr.f32.gmra.mxu0 %v1155
        %v1157 = vpop.f32.mrf.mxu0
        %v1158 = vadd.f32 %v889, %v1157
        %v1159 = vpop.f32.mrf.mxu0
        %1160 = vmatprep.mubr.f32.mxu0 0.0
        %v1161 = vand.u32 %v308, 4294901760
        %v1162 = vsub.f32 %v308, %v1161
        %1163 = vmatmul.mubr.f32.gmra.mxu0 %v1162
        %v1164 = vpop.f32.mrf.mxu0
        %v1165 = vadd.f32 %v895, %v1164
        %v1166 = vpop.f32.mrf.mxu0
        %1167 = vmatprep.mubr.f32.mxu0 0.0
        %v1168 = vand.u32 %v311, 4294901760
        %v1169 = vsub.f32 %v311, %v1168
        %1170 = vmatmul.mubr.f32.gmra.mxu0 %v1169
        %v1171 = vpop.f32.mrf.mxu0
        %v1172 = vadd.f32 %v901, %v1171
        %v1173 = vpop.f32.mrf.mxu0
        %1174 = vmatprep.mubr.f32.mxu0 0.0
        %v1175 = vand.u32 %v314, 4294901760
        %v1176 = vsub.f32 %v314, %v1175
        %1177 = vmatmul.mubr.f32.gmra.mxu0 %v1176
        %v1178 = vpop.f32.mrf.mxu0
        %v1179 = vadd.f32 %v907, %v1178
        %v1180 = vpop.f32.mrf.mxu0
        %1181 = vmatprep.mubr.f32.mxu0 0.0
        %v1182 = vand.u32 %v317, 4294901760
        %v1183 = vsub.f32 %v317, %v1182
        %1184 = vmatmul.mubr.f32.gmra.mxu0 %v1183
        %v1185 = vpop.f32.mrf.mxu0
        %v1186 = vadd.f32 %v913, %v1185
        %v1187 = vpop.f32.mrf.mxu0
        %1188 = vmatprep.mubr.f32.mxu0 0.0
        %v1189 = vand.u32 %v320, 4294901760
        %v1190 = vsub.f32 %v320, %v1189
        %1191 = vmatmul.mubr.f32.gmra.mxu0 %v1190
        %v1192 = vpop.f32.mrf.mxu0
        %v1193 = vadd.f32 %v919, %v1192
        %v1194 = vpop.f32.mrf.mxu0
        %1195 = vmatprep.mubr.f32.mxu0 0.0
        %v1196 = vand.u32 %v323, 4294901760
        %v1197 = vsub.f32 %v323, %v1196
        %1198 = vmatmul.mubr.f32.gmra.mxu0 %v1197
        %v1199 = vpop.f32.mrf.mxu0
        %v1200 = vadd.f32 %v925, %v1199
        %v1201 = vpop.f32.mrf.mxu0
        %1202 = vmatprep.mubr.f32.mxu0 0.0
        %v1203 = vand.u32 %v326, 4294901760
        %v1204 = vsub.f32 %v326, %v1203
        %1205 = vmatmul.mubr.f32.gmra.mxu0 %v1204
        %v1206 = vpop.f32.mrf.mxu0
        %v1207 = vadd.f32 %v931, %v1206
        %v1208 = vpop.f32.mrf.mxu0
        %1209 = vmatprep.mubr.f32.mxu0 0.0
        %v1210 = vand.u32 %v329, 4294901760
        %v1211 = vsub.f32 %v329, %v1210
        %1212 = vmatmul.mubr.f32.gmra.mxu0 %v1211
        %v1213 = vpop.f32.mrf.mxu0
        %v1214 = vadd.f32 %v937, %v1213
        %v1215 = vpop.f32.mrf.mxu0
        %1216 = vmatprep.mubr.f32.mxu0 0.0
        %v1217 = vand.u32 %v332, 4294901760
        %v1218 = vsub.f32 %v332, %v1217
        %1219 = vmatmul.mubr.f32.gmra.mxu0 %v1218
        %v1220 = vpop.f32.mrf.mxu0
        %v1221 = vadd.f32 %v943, %v1220
        %v1222 = vpop.f32.mrf.mxu0
        %1223 = vmatprep.mubr.f32.mxu0 0.0
        %v1224 = vand.u32 %v335, 4294901760
        %v1225 = vsub.f32 %v335, %v1224
        %1226 = vmatmul.mubr.f32.gmra.mxu0 %v1225
        %v1227 = vpop.f32.mrf.mxu0
        %v1228 = vadd.f32 %v949, %v1227
        %v1229 = vpop.f32.mrf.mxu0
        %1230 = vmatprep.mubr.f32.mxu0 0.0
        %v1231 = vand.u32 %v338, 4294901760
        %v1232 = vsub.f32 %v338, %v1231
        %1233 = vmatmul.mubr.f32.gmra.mxu0 %v1232
        %v1234 = vpop.f32.mrf.mxu0
        %v1235 = vadd.f32 %v955, %v1234
        %v1236 = vpop.f32.mrf.mxu0
        %1237 = vmatprep.mubr.f32.mxu0 0.0
        %v1238 = vand.u32 %v341, 4294901760
        %v1239 = vsub.f32 %v341, %v1238
        %1240 = vmatmul.mubr.f32.gmra.mxu0 %v1239
        %v1241 = vpop.f32.mrf.mxu0
        %v1242 = vadd.f32 %v961, %v1241
        %v1243 = vpop.f32.mrf.mxu0
        %1244 = vmatprep.mubr.f32.mxu0 0.0
        %v1245 = vand.u32 %v344, 4294901760
        %v1246 = vsub.f32 %v344, %v1245
        %1247 = vmatmul.mubr.f32.gmra.mxu0 %v1246
        %v1248 = vpop.f32.mrf.mxu0
        %v1249 = vadd.f32 %v967, %v1248
        %v1250 = vpop.f32.mrf.mxu0
        %1251 = vmatprep.mubr.f32.mxu0 0.0
        %v1252 = vand.u32 %v347, 4294901760
        %v1253 = vsub.f32 %v347, %v1252
        %1254 = vmatmul.mubr.f32.gmra.mxu0 %v1253
        %v1255 = vpop.f32.mrf.mxu0
        %v1256 = vadd.f32 %v973, %v1255
        %v1257 = vpop.f32.mrf.mxu0
        %1258 = vmatprep.mubr.f32.mxu0 0.0
        %v1259 = vand.u32 %v350, 4294901760
        %v1260 = vsub.f32 %v350, %v1259
        %1261 = vmatmul.mubr.f32.gmra.mxu0 %v1260
        %v1262 = vpop.f32.mrf.mxu0
        %v1263 = vadd.f32 %v979, %v1262
        %v1264 = vpop.f32.mrf.mxu0
        %1265 = vmatprep.mubr.f32.mxu0 0.0
        %v1266 = vand.u32 %v353, 4294901760
        %v1267 = vsub.f32 %v353, %v1266
        %1268 = vmatmul.mubr.f32.gmra.mxu0 %v1267
        %v1269 = vpop.f32.mrf.mxu0
        %v1270 = vadd.f32 %v985, %v1269
        %v1271 = vpop.f32.mrf.mxu0
        %1272 = vmatprep.mubr.f32.mxu0 0.0
        %v1273 = vand.u32 %v356, 4294901760
        %v1274 = vsub.f32 %v356, %v1273
        %1275 = vmatmul.mubr.f32.gmra.mxu0 %v1274
        %v1276 = vpop.f32.mrf.mxu0
        %v1277 = vadd.f32 %v991, %v1276
        %v1278 = vpop.f32.mrf.mxu0
        %1279 = vmatprep.mubr.f32.mxu0 0.0
        %v1280 = vand.u32 %v359, 4294901760
        %v1281 = vsub.f32 %v359, %v1280
        %1282 = vmatmul.mubr.f32.gmra.mxu0 %v1281
        %v1283 = vpop.f32.mrf.mxu0
        %v1284 = vadd.f32 %v997, %v1283
        %v1285 = vpop.f32.mrf.mxu0
        %1286 = vmatprep.mubr.f32.mxu0 0.0
        %v1287 = vand.u32 %v362, 4294901760
        %v1288 = vsub.f32 %v362, %v1287
        %1289 = vmatmul.mubr.f32.gmra.mxu0 %v1288
        %v1290 = vpop.f32.mrf.mxu0
        %v1291 = vadd.f32 %v1003, %v1290
        %v1292 = vpop.f32.mrf.mxu0
        %1293 = vmatprep.mubr.f32.mxu0 0.0
        %v1294 = vand.u32 %v365, 4294901760
        %v1295 = vsub.f32 %v365, %v1294
        %1296 = vmatmul.mubr.f32.gmra.mxu0 %v1295
        %v1297 = vpop.f32.mrf.mxu0
        %v1298 = vadd.f32 %v1009, %v1297
        %v1299 = vpop.f32.mrf.mxu0
        %1300 = vmatprep.mubr.f32.mxu0 0.0
        %v1301 = vand.u32 %v368, 4294901760
        %v1302 = vsub.f32 %v368, %v1301
        %1303 = vmatmul.mubr.f32.gmra.mxu0 %v1302
        %v1304 = vpop.f32.mrf.mxu0
        %v1305 = vadd.f32 %v1015, %v1304
        %v1306 = vpop.f32.mrf.mxu0
        %1307 = vmatprep.mubr.f32.mxu0 0.0
        %v1308 = vand.u32 %v371, 4294901760
        %v1309 = vsub.f32 %v371, %v1308
        %1310 = vmatmul.mubr.f32.gmra.mxu0 %v1309
        %v1311 = vpop.f32.mrf.mxu0
        %v1312 = vadd.f32 %v1021, %v1311
        %v1313 = vpop.f32.mrf.mxu0
        %1314 = vdwg.mxu0
        %1315 = vmatprep.subr.mxu0 0.0
        %1316 = vmatpush1.xpose.msra.mxu0 0.0
        %1317 = vmatprep.subr.mxu0 0.0
        %1318 = vmatpush1.xpose.msra.mxu0 0.0
        %1319 = vmatprep.subr.mxu0 0.0
        %1320 = vmatpush1.xpose.msra.mxu0 0.0
        %1321 = vmatprep.subr.mxu0 0.0
        %1322 = vmatpush1.xpose.msra.mxu0 0.0
        %1323 = vmatprep.subr.mxu0 0.0
        %1324 = vmatpush1.xpose.msra.mxu0 0.0
        %1325 = vmatprep.subr.mxu0 0.0
        %1326 = vmatpush1.xpose.msra.mxu0 0.0
        %1327 = vmatprep.subr.mxu0 0.0
        %1328 = vmatpush1.xpose.msra.mxu0 0.0
        %1329 = vmatprep.subr.mxu0 0.0
        %1330 = vmatpush1.xpose.msra.mxu0 0.0
        %1331 = vmatprep.subr.mxu0 0.0
        %1332 = vmatpush1.xpose.msra.mxu0 0.0
        %1333 = vmatprep.subr.mxu0 0.0
        %1334 = vmatpush1.xpose.msra.mxu0 0.0
        %1335 = vmatprep.subr.mxu0 0.0
        %1336 = vmatpush1.xpose.msra.mxu0 0.0
        %1337 = vmatprep.subr.mxu0 0.0
        %1338 = vmatpush1.xpose.msra.mxu0 0.0
        %1339 = vmatprep.subr.mxu0 0.0
        %1340 = vmatpush1.xpose.msra.mxu0 0.0
        %1341 = vmatprep.subr.mxu0 0.0
        %1342 = vmatpush1.xpose.msra.mxu0 0.0
        %1343 = vmatprep.subr.mxu0 0.0
        %1344 = vmatpush1.xpose.msra.mxu0 0.0
        %1345 = vmatprep.subr.mxu0 0.0
        %v1346 = vand.u32 %v374, 4294901760
        %1347 = vmatpush1.xpose.msra.mxu0 %v1346
        %1348 = vmatprep.subr.mxu0 0.0
        %1349 = vmatpush2.xpose.msra.mxu0 0.0
        %1350 = vmatprep.subr.mxu0 0.0
        %1351 = vmatpush2.xpose.msra.mxu0 0.0
        %1352 = vmatprep.subr.mxu0 0.0
        %1353 = vmatpush2.xpose.msra.mxu0 0.0
        %1354 = vmatprep.subr.mxu0 0.0
        %1355 = vmatpush2.xpose.msra.mxu0 0.0
        %1356 = vmatprep.subr.mxu0 0.0
        %1357 = vmatpush2.xpose.msra.mxu0 0.0
        %1358 = vmatprep.subr.mxu0 0.0
        %1359 = vmatpush2.xpose.msra.mxu0 0.0
        %1360 = vmatprep.subr.mxu0 0.0
        %1361 = vmatpush2.xpose.msra.mxu0 0.0
        %1362 = vmatprep.subr.mxu0 0.0
        %1363 = vmatpush2.xpose.msra.mxu0 0.0
        %1364 = vmatprep.subr.mxu0 0.0
        %1365 = vmatpush2.xpose.msra.mxu0 0.0
        %1366 = vmatprep.subr.mxu0 0.0
        %1367 = vmatpush2.xpose.msra.mxu0 0.0
        %1368 = vmatprep.subr.mxu0 0.0
        %1369 = vmatpush2.xpose.msra.mxu0 0.0
        %1370 = vmatprep.subr.mxu0 0.0
        %1371 = vmatpush2.xpose.msra.mxu0 0.0
        %1372 = vmatprep.subr.mxu0 0.0
        %1373 = vmatpush2.xpose.msra.mxu0 0.0
        %1374 = vmatprep.subr.mxu0 0.0
        %1375 = vmatpush2.xpose.msra.mxu0 0.0
        %1376 = vmatprep.subr.mxu0 0.0
        %1377 = vmatpush2.xpose.msra.mxu0 0.0
        %1378 = vmatprep.subr.mxu0 0.0
        %1379 = vmatpush2.xpose.msra.mxu0 0.0
        %1380 = vmatprep.mubr.f32.mxu0 0.0
        %v1381 = vand.u32 %v278, 4294901760
        %v1382 = vsub.f32 %v278, %v1381
        %v1383 = vand.u32 %v1382, 4294901760
        %1384 = vmatmul.mubr.f32.gmra.mxu0 %v1383
        %v1385 = vpop.f32.mrf.mxu0
        %v1386 = vadd.f32 %v1095, %v1385
        %v1387 = vpop.f32.mrf.mxu0
        %1388 = vmatprep.mubr.f32.mxu0 0.0
        %v1389 = vand.u32 %v281, 4294901760
        %v1390 = vsub.f32 %v281, %v1389
        %v1391 = vand.u32 %v1390, 4294901760
        %1392 = vmatmul.mubr.f32.gmra.mxu0 %v1391
        %v1393 = vpop.f32.mrf.mxu0
        %v1394 = vadd.f32 %v1102, %v1393
        %v1395 = vpop.f32.mrf.mxu0
        %1396 = vmatprep.mubr.f32.mxu0 0.0
        %v1397 = vand.u32 %v284, 4294901760
        %v1398 = vsub.f32 %v284, %v1397
        %v1399 = vand.u32 %v1398, 4294901760
        %1400 = vmatmul.mubr.f32.gmra.mxu0 %v1399
        %v1401 = vpop.f32.mrf.mxu0
        %v1402 = vadd.f32 %v1109, %v1401
        %v1403 = vpop.f32.mrf.mxu0
        %1404 = vmatprep.mubr.f32.mxu0 0.0
        %v1405 = vand.u32 %v287, 4294901760
        %v1406 = vsub.f32 %v287, %v1405
        %v1407 = vand.u32 %v1406, 4294901760
        %1408 = vmatmul.mubr.f32.gmra.mxu0 %v1407
        %v1409 = vpop.f32.mrf.mxu0
        %v1410 = vadd.f32 %v1116, %v1409
        %v1411 = vpop.f32.mrf.mxu0
        %1412 = vmatprep.mubr.f32.mxu0 0.0
        %v1413 = vand.u32 %v290, 4294901760
        %v1414 = vsub.f32 %v290, %v1413
        %v1415 = vand.u32 %v1414, 4294901760
        %1416 = vmatmul.mubr.f32.gmra.mxu0 %v1415
        %v1417 = vpop.f32.mrf.mxu0
        %v1418 = vadd.f32 %v1123, %v1417
        %v1419 = vpop.f32.mrf.mxu0
        %1420 = vmatprep.mubr.f32.mxu0 0.0
        %v1421 = vand.u32 %v293, 4294901760
        %v1422 = vsub.f32 %v293, %v1421
        %v1423 = vand.u32 %v1422, 4294901760
        %1424 = vmatmul.mubr.f32.gmra.mxu0 %v1423
        %v1425 = vpop.f32.mrf.mxu0
        %v1426 = vadd.f32 %v1130, %v1425
        %v1427 = vpop.f32.mrf.mxu0
        %1428 = vmatprep.mubr.f32.mxu0 0.0
        %v1429 = vand.u32 %v296, 4294901760
        %v1430 = vsub.f32 %v296, %v1429
        %v1431 = vand.u32 %v1430, 4294901760
        %1432 = vmatmul.mubr.f32.gmra.mxu0 %v1431
        %v1433 = vpop.f32.mrf.mxu0
        %v1434 = vadd.f32 %v1137, %v1433
        %v1435 = vpop.f32.mrf.mxu0
        %1436 = vmatprep.mubr.f32.mxu0 0.0
        %v1437 = vand.u32 %v299, 4294901760
        %v1438 = vsub.f32 %v299, %v1437
        %v1439 = vand.u32 %v1438, 4294901760
        %1440 = vmatmul.mubr.f32.gmra.mxu0 %v1439
        %v1441 = vpop.f32.mrf.mxu0
        %v1442 = vadd.f32 %v1144, %v1441
        %v1443 = vpop.f32.mrf.mxu0
        %1444 = vmatprep.mubr.f32.mxu0 0.0
        %v1445 = vand.u32 %v302, 4294901760
        %v1446 = vsub.f32 %v302, %v1445
        %v1447 = vand.u32 %v1446, 4294901760
        %1448 = vmatmul.mubr.f32.gmra.mxu0 %v1447
        %v1449 = vpop.f32.mrf.mxu0
        %v1450 = vadd.f32 %v1151, %v1449
        %v1451 = vpop.f32.mrf.mxu0
        %1452 = vmatprep.mubr.f32.mxu0 0.0
        %v1453 = vand.u32 %v305, 4294901760
        %v1454 = vsub.f32 %v305, %v1453
        %v1455 = vand.u32 %v1454, 4294901760
        %1456 = vmatmul.mubr.f32.gmra.mxu0 %v1455
        %v1457 = vpop.f32.mrf.mxu0
        %v1458 = vadd.f32 %v1158, %v1457
        %v1459 = vpop.f32.mrf.mxu0
        %1460 = vmatprep.mubr.f32.mxu0 0.0
        %v1461 = vand.u32 %v308, 4294901760
        %v1462 = vsub.f32 %v308, %v1461
        %v1463 = vand.u32 %v1462, 4294901760
        %1464 = vmatmul.mubr.f32.gmra.mxu0 %v1463
        %v1465 = vpop.f32.mrf.mxu0
        %v1466 = vadd.f32 %v1165, %v1465
        %v1467 = vpop.f32.mrf.mxu0
        %1468 = vmatprep.mubr.f32.mxu0 0.0
        %v1469 = vand.u32 %v311, 4294901760
        %v1470 = vsub.f32 %v311, %v1469
        %v1471 = vand.u32 %v1470, 4294901760
        %1472 = vmatmul.mubr.f32.gmra.mxu0 %v1471
        %v1473 = vpop.f32.mrf.mxu0
        %v1474 = vadd.f32 %v1172, %v1473
        %v1475 = vpop.f32.mrf.mxu0
        %1476 = vmatprep.mubr.f32.mxu0 0.0
        %v1477 = vand.u32 %v314, 4294901760
        %v1478 = vsub.f32 %v314, %v1477
        %v1479 = vand.u32 %v1478, 4294901760
        %1480 = vmatmul.mubr.f32.gmra.mxu0 %v1479
        %v1481 = vpop.f32.mrf.mxu0
        %v1482 = vadd.f32 %v1179, %v1481
        %v1483 = vpop.f32.mrf.mxu0
        %1484 = vmatprep.mubr.f32.mxu0 0.0
        %v1485 = vand.u32 %v317, 4294901760
        %v1486 = vsub.f32 %v317, %v1485
        %v1487 = vand.u32 %v1486, 4294901760
        %1488 = vmatmul.mubr.f32.gmra.mxu0 %v1487
        %v1489 = vpop.f32.mrf.mxu0
        %v1490 = vadd.f32 %v1186, %v1489
        %v1491 = vpop.f32.mrf.mxu0
        %1492 = vmatprep.mubr.f32.mxu0 0.0
        %v1493 = vand.u32 %v320, 4294901760
        %v1494 = vsub.f32 %v320, %v1493
        %v1495 = vand.u32 %v1494, 4294901760
        %1496 = vmatmul.mubr.f32.gmra.mxu0 %v1495
        %v1497 = vpop.f32.mrf.mxu0
        %v1498 = vadd.f32 %v1193, %v1497
        %v1499 = vpop.f32.mrf.mxu0
        %1500 = vmatprep.mubr.f32.mxu0 0.0
        %v1501 = vand.u32 %v323, 4294901760
        %v1502 = vsub.f32 %v323, %v1501
        %v1503 = vand.u32 %v1502, 4294901760
        %1504 = vmatmul.mubr.f32.gmra.mxu0 %v1503
        %v1505 = vpop.f32.mrf.mxu0
        %v1506 = vadd.f32 %v1200, %v1505
        %v1507 = vpop.f32.mrf.mxu0
        %1508 = vmatprep.mubr.f32.mxu0 0.0
        %v1509 = vand.u32 %v326, 4294901760
        %v1510 = vsub.f32 %v326, %v1509
        %v1511 = vand.u32 %v1510, 4294901760
        %1512 = vmatmul.mubr.f32.gmra.mxu0 %v1511
        %v1513 = vpop.f32.mrf.mxu0
        %v1514 = vadd.f32 %v1207, %v1513
        %v1515 = vpop.f32.mrf.mxu0
        %1516 = vmatprep.mubr.f32.mxu0 0.0
        %v1517 = vand.u32 %v329, 4294901760
        %v1518 = vsub.f32 %v329, %v1517
        %v1519 = vand.u32 %v1518, 4294901760
        %1520 = vmatmul.mubr.f32.gmra.mxu0 %v1519
        %v1521 = vpop.f32.mrf.mxu0
        %v1522 = vadd.f32 %v1214, %v1521
        %v1523 = vpop.f32.mrf.mxu0
        %1524 = vmatprep.mubr.f32.mxu0 0.0
        %v1525 = vand.u32 %v332, 4294901760
        %v1526 = vsub.f32 %v332, %v1525
        %v1527 = vand.u32 %v1526, 4294901760
        %1528 = vmatmul.mubr.f32.gmra.mxu0 %v1527
        %v1529 = vpop.f32.mrf.mxu0
        %v1530 = vadd.f32 %v1221, %v1529
        %v1531 = vpop.f32.mrf.mxu0
        %1532 = vmatprep.mubr.f32.mxu0 0.0
        %v1533 = vand.u32 %v335, 4294901760
        %v1534 = vsub.f32 %v335, %v1533
        %v1535 = vand.u32 %v1534, 4294901760
        %1536 = vmatmul.mubr.f32.gmra.mxu0 %v1535
        %v1537 = vpop.f32.mrf.mxu0
        %v1538 = vadd.f32 %v1228, %v1537
        %v1539 = vpop.f32.mrf.mxu0
        %1540 = vmatprep.mubr.f32.mxu0 0.0
        %v1541 = vand.u32 %v338, 4294901760
        %v1542 = vsub.f32 %v338, %v1541
        %v1543 = vand.u32 %v1542, 4294901760
        %1544 = vmatmul.mubr.f32.gmra.mxu0 %v1543
        %v1545 = vpop.f32.mrf.mxu0
        %v1546 = vadd.f32 %v1235, %v1545
        %v1547 = vpop.f32.mrf.mxu0
        %1548 = vmatprep.mubr.f32.mxu0 0.0
        %v1549 = vand.u32 %v341, 4294901760
        %v1550 = vsub.f32 %v341, %v1549
        %v1551 = vand.u32 %v1550, 4294901760
        %1552 = vmatmul.mubr.f32.gmra.mxu0 %v1551
        %v1553 = vpop.f32.mrf.mxu0
        %v1554 = vadd.f32 %v1242, %v1553
        %v1555 = vpop.f32.mrf.mxu0
        %1556 = vmatprep.mubr.f32.mxu0 0.0
        %v1557 = vand.u32 %v344, 4294901760
        %v1558 = vsub.f32 %v344, %v1557
        %v1559 = vand.u32 %v1558, 4294901760
        %1560 = vmatmul.mubr.f32.gmra.mxu0 %v1559
        %v1561 = vpop.f32.mrf.mxu0
        %v1562 = vadd.f32 %v1249, %v1561
        %v1563 = vpop.f32.mrf.mxu0
        %1564 = vmatprep.mubr.f32.mxu0 0.0
        %v1565 = vand.u32 %v347, 4294901760
        %v1566 = vsub.f32 %v347, %v1565
        %v1567 = vand.u32 %v1566, 4294901760
        %1568 = vmatmul.mubr.f32.gmra.mxu0 %v1567
        %v1569 = vpop.f32.mrf.mxu0
        %v1570 = vadd.f32 %v1256, %v1569
        %v1571 = vpop.f32.mrf.mxu0
        %1572 = vmatprep.mubr.f32.mxu0 0.0
        %v1573 = vand.u32 %v350, 4294901760
        %v1574 = vsub.f32 %v350, %v1573
        %v1575 = vand.u32 %v1574, 4294901760
        %1576 = vmatmul.mubr.f32.gmra.mxu0 %v1575
        %v1577 = vpop.f32.mrf.mxu0
        %v1578 = vadd.f32 %v1263, %v1577
        %v1579 = vpop.f32.mrf.mxu0
        %1580 = vmatprep.mubr.f32.mxu0 0.0
        %v1581 = vand.u32 %v353, 4294901760
        %v1582 = vsub.f32 %v353, %v1581
        %v1583 = vand.u32 %v1582, 4294901760
        %1584 = vmatmul.mubr.f32.gmra.mxu0 %v1583
        %v1585 = vpop.f32.mrf.mxu0
        %v1586 = vadd.f32 %v1270, %v1585
        %v1587 = vpop.f32.mrf.mxu0
        %1588 = vmatprep.mubr.f32.mxu0 0.0
        %v1589 = vand.u32 %v356, 4294901760
        %v1590 = vsub.f32 %v356, %v1589
        %v1591 = vand.u32 %v1590, 4294901760
        %1592 = vmatmul.mubr.f32.gmra.mxu0 %v1591
        %v1593 = vpop.f32.mrf.mxu0
        %v1594 = vadd.f32 %v1277, %v1593
        %v1595 = vpop.f32.mrf.mxu0
        %1596 = vmatprep.mubr.f32.mxu0 0.0
        %v1597 = vand.u32 %v359, 4294901760
        %v1598 = vsub.f32 %v359, %v1597
        %v1599 = vand.u32 %v1598, 4294901760
        %1600 = vmatmul.mubr.f32.gmra.mxu0 %v1599
        %v1601 = vpop.f32.mrf.mxu0
        %v1602 = vadd.f32 %v1284, %v1601
        %v1603 = vpop.f32.mrf.mxu0
        %1604 = vmatprep.mubr.f32.mxu0 0.0
        %v1605 = vand.u32 %v362, 4294901760
        %v1606 = vsub.f32 %v362, %v1605
        %v1607 = vand.u32 %v1606, 4294901760
        %1608 = vmatmul.mubr.f32.gmra.mxu0 %v1607
        %v1609 = vpop.f32.mrf.mxu0
        %v1610 = vadd.f32 %v1291, %v1609
        %v1611 = vpop.f32.mrf.mxu0
        %1612 = vmatprep.mubr.f32.mxu0 0.0
        %v1613 = vand.u32 %v365, 4294901760
        %v1614 = vsub.f32 %v365, %v1613
        %v1615 = vand.u32 %v1614, 4294901760
        %1616 = vmatmul.mubr.f32.gmra.mxu0 %v1615
        %v1617 = vpop.f32.mrf.mxu0
        %v1618 = vadd.f32 %v1298, %v1617
        %v1619 = vpop.f32.mrf.mxu0
        %1620 = vmatprep.mubr.f32.mxu0 0.0
        %v1621 = vand.u32 %v368, 4294901760
        %v1622 = vsub.f32 %v368, %v1621
        %v1623 = vand.u32 %v1622, 4294901760
        %1624 = vmatmul.mubr.f32.gmra.mxu0 %v1623
        %v1625 = vpop.f32.mrf.mxu0
        %v1626 = vadd.f32 %v1305, %v1625
        %v1627 = vpop.f32.mrf.mxu0
        %1628 = vmatprep.mubr.f32.mxu0 0.0
        %v1629 = vand.u32 %v371, 4294901760
        %v1630 = vsub.f32 %v371, %v1629
        %v1631 = vand.u32 %v1630, 4294901760
        %1632 = vmatmul.mubr.f32.gmra.mxu0 %v1631
        %v1633 = vpop.f32.mrf.mxu0
        %v1634 = vadd.f32 %v1312, %v1633
        %v1635 = vpop.f32.mrf.mxu0
        %1636 = vdwg.mxu0
        %1637 = vmatprep.subr.mxu0 0.0
        %1638 = vmatpush1.xpose.msra.mxu0 0.0
        %1639 = vmatprep.subr.mxu0 0.0
        %1640 = vmatpush1.xpose.msra.mxu0 0.0
        %1641 = vmatprep.subr.mxu0 0.0
        %1642 = vmatpush1.xpose.msra.mxu0 0.0
        %1643 = vmatprep.subr.mxu0 0.0
        %1644 = vmatpush1.xpose.msra.mxu0 0.0
        %1645 = vmatprep.subr.mxu0 0.0
        %1646 = vmatpush1.xpose.msra.mxu0 0.0
        %1647 = vmatprep.subr.mxu0 0.0
        %1648 = vmatpush1.xpose.msra.mxu0 0.0
        %1649 = vmatprep.subr.mxu0 0.0
        %1650 = vmatpush1.xpose.msra.mxu0 0.0
        %1651 = vmatprep.subr.mxu0 0.0
        %1652 = vmatpush1.xpose.msra.mxu0 0.0
        %1653 = vmatprep.subr.mxu0 0.0
        %1654 = vmatpush1.xpose.msra.mxu0 0.0
        %1655 = vmatprep.subr.mxu0 0.0
        %1656 = vmatpush1.xpose.msra.mxu0 0.0
        %1657 = vmatprep.subr.mxu0 0.0
        %1658 = vmatpush1.xpose.msra.mxu0 0.0
        %1659 = vmatprep.subr.mxu0 0.0
        %1660 = vmatpush1.xpose.msra.mxu0 0.0
        %1661 = vmatprep.subr.mxu0 0.0
        %1662 = vmatpush1.xpose.msra.mxu0 0.0
        %1663 = vmatprep.subr.mxu0 0.0
        %1664 = vmatpush1.xpose.msra.mxu0 0.0
        %1665 = vmatprep.subr.mxu0 0.0
        %1666 = vmatpush1.xpose.msra.mxu0 0.0
        %1667 = vmatprep.subr.mxu0 0.0
        %v1668 = vand.u32 %v374, 4294901760
        %v1669 = vsub.f32 %v374, %v1668
        %v1670 = vand.u32 %v1669, 4294901760
        %1671 = vmatpush1.xpose.msra.mxu0 %v1670
        %1672 = vmatprep.subr.mxu0 0.0
        %1673 = vmatpush2.xpose.msra.mxu0 0.0
        %1674 = vmatprep.subr.mxu0 0.0
        %1675 = vmatpush2.xpose.msra.mxu0 0.0
        %1676 = vmatprep.subr.mxu0 0.0
        %1677 = vmatpush2.xpose.msra.mxu0 0.0
        %1678 = vmatprep.subr.mxu0 0.0
        %1679 = vmatpush2.xpose.msra.mxu0 0.0
        %1680 = vmatprep.subr.mxu0 0.0
        %1681 = vmatpush2.xpose.msra.mxu0 0.0
        %1682 = vmatprep.subr.mxu0 0.0
        %1683 = vmatpush2.xpose.msra.mxu0 0.0
        %1684 = vmatprep.subr.mxu0 0.0
        %1685 = vmatpush2.xpose.msra.mxu0 0.0
        %1686 = vmatprep.subr.mxu0 0.0
        %1687 = vmatpush2.xpose.msra.mxu0 0.0
        %1688 = vmatprep.subr.mxu0 0.0
        %1689 = vmatpush2.xpose.msra.mxu0 0.0
        %1690 = vmatprep.subr.mxu0 0.0
        %1691 = vmatpush2.xpose.msra.mxu0 0.0
        %1692 = vmatprep.subr.mxu0 0.0
        %1693 = vmatpush2.xpose.msra.mxu0 0.0
        %1694 = vmatprep.subr.mxu0 0.0
        %1695 = vmatpush2.xpose.msra.mxu0 0.0
        %1696 = vmatprep.subr.mxu0 0.0
        %1697 = vmatpush2.xpose.msra.mxu0 0.0
        %1698 = vmatprep.subr.mxu0 0.0
        %1699 = vmatpush2.xpose.msra.mxu0 0.0
        %1700 = vmatprep.subr.mxu0 0.0
        %1701 = vmatpush2.xpose.msra.mxu0 0.0
        %1702 = vmatprep.subr.mxu0 0.0
        %1703 = vmatpush2.xpose.msra.mxu0 0.0
        %1704 = vmatprep.mubr.f32.mxu0 0.0
        %v1705 = vand.u32 %v278, 4294901760
        %1706 = vmatmul.mubr.f32.gmra.mxu0 %v1705
        %v1707 = vpop.f32.mrf.mxu0
        %v1708 = vadd.f32 %v1386, %v1707
        %v1709 = vpop.f32.mrf.mxu0
        %1710 = vmatprep.mubr.f32.mxu0 0.0
        %v1711 = vand.u32 %v281, 4294901760
        %1712 = vmatmul.mubr.f32.gmra.mxu0 %v1711
        %v1713 = vpop.f32.mrf.mxu0
        %v1714 = vadd.f32 %v1394, %v1713
        %v1715 = vpop.f32.mrf.mxu0
        %1716 = vmatprep.mubr.f32.mxu0 0.0
        %v1717 = vand.u32 %v284, 4294901760
        %1718 = vmatmul.mubr.f32.gmra.mxu0 %v1717
        %v1719 = vpop.f32.mrf.mxu0
        %v1720 = vadd.f32 %v1402, %v1719
        %v1721 = vpop.f32.mrf.mxu0
        %1722 = vmatprep.mubr.f32.mxu0 0.0
        %v1723 = vand.u32 %v287, 4294901760
        %1724 = vmatmul.mubr.f32.gmra.mxu0 %v1723
        %v1725 = vpop.f32.mrf.mxu0
        %v1726 = vadd.f32 %v1410, %v1725
        %v1727 = vpop.f32.mrf.mxu0
        %1728 = vmatprep.mubr.f32.mxu0 0.0
        %v1729 = vand.u32 %v290, 4294901760
        %1730 = vmatmul.mubr.f32.gmra.mxu0 %v1729
        %v1731 = vpop.f32.mrf.mxu0
        %v1732 = vadd.f32 %v1418, %v1731
        %v1733 = vpop.f32.mrf.mxu0
        %1734 = vmatprep.mubr.f32.mxu0 0.0
        %v1735 = vand.u32 %v293, 4294901760
        %1736 = vmatmul.mubr.f32.gmra.mxu0 %v1735
        %v1737 = vpop.f32.mrf.mxu0
        %v1738 = vadd.f32 %v1426, %v1737
        %v1739 = vpop.f32.mrf.mxu0
        %1740 = vmatprep.mubr.f32.mxu0 0.0
        %v1741 = vand.u32 %v296, 4294901760
        %1742 = vmatmul.mubr.f32.gmra.mxu0 %v1741
        %v1743 = vpop.f32.mrf.mxu0
        %v1744 = vadd.f32 %v1434, %v1743
        %v1745 = vpop.f32.mrf.mxu0
        %1746 = vmatprep.mubr.f32.mxu0 0.0
        %v1747 = vand.u32 %v299, 4294901760
        %1748 = vmatmul.mubr.f32.gmra.mxu0 %v1747
        %v1749 = vpop.f32.mrf.mxu0
        %v1750 = vadd.f32 %v1442, %v1749
        %v1751 = vpop.f32.mrf.mxu0
        %1752 = vmatprep.mubr.f32.mxu0 0.0
        %v1753 = vand.u32 %v302, 4294901760
        %1754 = vmatmul.mubr.f32.gmra.mxu0 %v1753
        %v1755 = vpop.f32.mrf.mxu0
        %v1756 = vadd.f32 %v1450, %v1755
        %v1757 = vpop.f32.mrf.mxu0
        %1758 = vmatprep.mubr.f32.mxu0 0.0
        %v1759 = vand.u32 %v305, 4294901760
        %1760 = vmatmul.mubr.f32.gmra.mxu0 %v1759
        %v1761 = vpop.f32.mrf.mxu0
        %v1762 = vadd.f32 %v1458, %v1761
        %v1763 = vpop.f32.mrf.mxu0
        %1764 = vmatprep.mubr.f32.mxu0 0.0
        %v1765 = vand.u32 %v308, 4294901760
        %1766 = vmatmul.mubr.f32.gmra.mxu0 %v1765
        %v1767 = vpop.f32.mrf.mxu0
        %v1768 = vadd.f32 %v1466, %v1767
        %v1769 = vpop.f32.mrf.mxu0
        %1770 = vmatprep.mubr.f32.mxu0 0.0
        %v1771 = vand.u32 %v311, 4294901760
        %1772 = vmatmul.mubr.f32.gmra.mxu0 %v1771
        %v1773 = vpop.f32.mrf.mxu0
        %v1774 = vadd.f32 %v1474, %v1773
        %v1775 = vpop.f32.mrf.mxu0
        %1776 = vmatprep.mubr.f32.mxu0 0.0
        %v1777 = vand.u32 %v314, 4294901760
        %1778 = vmatmul.mubr.f32.gmra.mxu0 %v1777
        %v1779 = vpop.f32.mrf.mxu0
        %v1780 = vadd.f32 %v1482, %v1779
        %v1781 = vpop.f32.mrf.mxu0
        %1782 = vmatprep.mubr.f32.mxu0 0.0
        %v1783 = vand.u32 %v317, 4294901760
        %1784 = vmatmul.mubr.f32.gmra.mxu0 %v1783
        %v1785 = vpop.f32.mrf.mxu0
        %v1786 = vadd.f32 %v1490, %v1785
        %v1787 = vpop.f32.mrf.mxu0
        %1788 = vmatprep.mubr.f32.mxu0 0.0
        %v1789 = vand.u32 %v320, 4294901760
        %1790 = vmatmul.mubr.f32.gmra.mxu0 %v1789
        %v1791 = vpop.f32.mrf.mxu0
        %v1792 = vadd.f32 %v1498, %v1791
        %v1793 = vpop.f32.mrf.mxu0
        %1794 = vmatprep.mubr.f32.mxu0 0.0
        %v1795 = vand.u32 %v323, 4294901760
        %1796 = vmatmul.mubr.f32.gmra.mxu0 %v1795
        %v1797 = vpop.f32.mrf.mxu0
        %v1798 = vadd.f32 %v1506, %v1797
        %v1799 = vpop.f32.mrf.mxu0
        %1800 = vmatprep.mubr.f32.mxu0 0.0
        %v1801 = vand.u32 %v326, 4294901760
        %1802 = vmatmul.mubr.f32.gmra.mxu0 %v1801
        %v1803 = vpop.f32.mrf.mxu0
        %v1804 = vadd.f32 %v1514, %v1803
        %v1805 = vpop.f32.mrf.mxu0
        %1806 = vmatprep.mubr.f32.mxu0 0.0
        %v1807 = vand.u32 %v329, 4294901760
        %1808 = vmatmul.mubr.f32.gmra.mxu0 %v1807
        %v1809 = vpop.f32.mrf.mxu0
        %v1810 = vadd.f32 %v1522, %v1809
        %v1811 = vpop.f32.mrf.mxu0
        %1812 = vmatprep.mubr.f32.mxu0 0.0
        %v1813 = vand.u32 %v332, 4294901760
        %1814 = vmatmul.mubr.f32.gmra.mxu0 %v1813
        %v1815 = vpop.f32.mrf.mxu0
        %v1816 = vadd.f32 %v1530, %v1815
        %v1817 = vpop.f32.mrf.mxu0
        %1818 = vmatprep.mubr.f32.mxu0 0.0
        %v1819 = vand.u32 %v335, 4294901760
        %1820 = vmatmul.mubr.f32.gmra.mxu0 %v1819
        %v1821 = vpop.f32.mrf.mxu0
        %v1822 = vadd.f32 %v1538, %v1821
        %v1823 = vpop.f32.mrf.mxu0
        %1824 = vmatprep.mubr.f32.mxu0 0.0
        %v1825 = vand.u32 %v338, 4294901760
        %1826 = vmatmul.mubr.f32.gmra.mxu0 %v1825
        %v1827 = vpop.f32.mrf.mxu0
        %v1828 = vadd.f32 %v1546, %v1827
        %v1829 = vpop.f32.mrf.mxu0
        %1830 = vmatprep.mubr.f32.mxu0 0.0
        %v1831 = vand.u32 %v341, 4294901760
        %1832 = vmatmul.mubr.f32.gmra.mxu0 %v1831
        %v1833 = vpop.f32.mrf.mxu0
        %v1834 = vadd.f32 %v1554, %v1833
        %v1835 = vpop.f32.mrf.mxu0
        %1836 = vmatprep.mubr.f32.mxu0 0.0
        %v1837 = vand.u32 %v344, 4294901760
        %1838 = vmatmul.mubr.f32.gmra.mxu0 %v1837
        %v1839 = vpop.f32.mrf.mxu0
        %v1840 = vadd.f32 %v1562, %v1839
        %v1841 = vpop.f32.mrf.mxu0
        %1842 = vmatprep.mubr.f32.mxu0 0.0
        %v1843 = vand.u32 %v347, 4294901760
        %1844 = vmatmul.mubr.f32.gmra.mxu0 %v1843
        %v1845 = vpop.f32.mrf.mxu0
        %v1846 = vadd.f32 %v1570, %v1845
        %v1847 = vpop.f32.mrf.mxu0
        %1848 = vmatprep.mubr.f32.mxu0 0.0
        %v1849 = vand.u32 %v350, 4294901760
        %1850 = vmatmul.mubr.f32.gmra.mxu0 %v1849
        %v1851 = vpop.f32.mrf.mxu0
        %v1852 = vadd.f32 %v1578, %v1851
        %v1853 = vpop.f32.mrf.mxu0
        %1854 = vmatprep.mubr.f32.mxu0 0.0
        %v1855 = vand.u32 %v353, 4294901760
        %1856 = vmatmul.mubr.f32.gmra.mxu0 %v1855
        %v1857 = vpop.f32.mrf.mxu0
        %v1858 = vadd.f32 %v1586, %v1857
        %v1859 = vpop.f32.mrf.mxu0
        %1860 = vmatprep.mubr.f32.mxu0 0.0
        %v1861 = vand.u32 %v356, 4294901760
        %1862 = vmatmul.mubr.f32.gmra.mxu0 %v1861
        %v1863 = vpop.f32.mrf.mxu0
        %v1864 = vadd.f32 %v1594, %v1863
        %v1865 = vpop.f32.mrf.mxu0
        %1866 = vmatprep.mubr.f32.mxu0 0.0
        %v1867 = vand.u32 %v359, 4294901760
        %1868 = vmatmul.mubr.f32.gmra.mxu0 %v1867
        %v1869 = vpop.f32.mrf.mxu0
        %v1870 = vadd.f32 %v1602, %v1869
        %v1871 = vpop.f32.mrf.mxu0
        %1872 = vmatprep.mubr.f32.mxu0 0.0
        %v1873 = vand.u32 %v362, 4294901760
        %1874 = vmatmul.mubr.f32.gmra.mxu0 %v1873
        %v1875 = vpop.f32.mrf.mxu0
        %v1876 = vadd.f32 %v1610, %v1875
        %v1877 = vpop.f32.mrf.mxu0
        %1878 = vmatprep.mubr.f32.mxu0 0.0
        %v1879 = vand.u32 %v365, 4294901760
        %1880 = vmatmul.mubr.f32.gmra.mxu0 %v1879
        %v1881 = vpop.f32.mrf.mxu0
        %v1882 = vadd.f32 %v1618, %v1881
        %v1883 = vpop.f32.mrf.mxu0
        %1884 = vmatprep.mubr.f32.mxu0 0.0
        %v1885 = vand.u32 %v368, 4294901760
        %1886 = vmatmul.mubr.f32.gmra.mxu0 %v1885
        %v1887 = vpop.f32.mrf.mxu0
        %v1888 = vadd.f32 %v1626, %v1887
        %v1889 = vpop.f32.mrf.mxu0
        %1890 = vmatprep.mubr.f32.mxu0 0.0
        %v1891 = vand.u32 %v371, 4294901760
        %1892 = vmatmul.mubr.f32.gmra.mxu0 %v1891
        %v1893 = vpop.f32.mrf.mxu0
        %v1894 = vadd.f32 %v1634, %v1893
        %v1895 = vpop.f32.mrf.mxu0
        %1896 = vdwg.mxu0
        %1897 = vmatprep.subr.mxu0 0.0
        %1898 = vmatpush1.xpose.msra.mxu0 0.0
        %1899 = vmatprep.subr.mxu0 0.0
        %1900 = vmatpush1.xpose.msra.mxu0 0.0
        %1901 = vmatprep.subr.mxu0 0.0
        %1902 = vmatpush1.xpose.msra.mxu0 0.0
        %1903 = vmatprep.subr.mxu0 0.0
        %1904 = vmatpush1.xpose.msra.mxu0 0.0
        %1905 = vmatprep.subr.mxu0 0.0
        %1906 = vmatpush1.xpose.msra.mxu0 0.0
        %1907 = vmatprep.subr.mxu0 0.0
        %1908 = vmatpush1.xpose.msra.mxu0 0.0
        %1909 = vmatprep.subr.mxu0 0.0
        %1910 = vmatpush1.xpose.msra.mxu0 0.0
        %1911 = vmatprep.subr.mxu0 0.0
        %1912 = vmatpush1.xpose.msra.mxu0 0.0
        %1913 = vmatprep.subr.mxu0 0.0
        %1914 = vmatpush1.xpose.msra.mxu0 0.0
        %1915 = vmatprep.subr.mxu0 0.0
        %1916 = vmatpush1.xpose.msra.mxu0 0.0
        %1917 = vmatprep.subr.mxu0 0.0
        %1918 = vmatpush1.xpose.msra.mxu0 0.0
        %1919 = vmatprep.subr.mxu0 0.0
        %1920 = vmatpush1.xpose.msra.mxu0 0.0
        %1921 = vmatprep.subr.mxu0 0.0
        %1922 = vmatpush1.xpose.msra.mxu0 0.0
        %1923 = vmatprep.subr.mxu0 0.0
        %1924 = vmatpush1.xpose.msra.mxu0 0.0
        %1925 = vmatprep.subr.mxu0 0.0
        %1926 = vmatpush1.xpose.msra.mxu0 0.0
        %1927 = vmatprep.subr.mxu0 0.0
        %v1928 = vand.u32 %v374, 4294901760
        %1929 = vmatpush1.xpose.msra.mxu0 %v1928
        %1930 = vmatprep.subr.mxu0 0.0
        %1931 = vmatpush2.xpose.msra.mxu0 0.0
        %1932 = vmatprep.subr.mxu0 0.0
        %1933 = vmatpush2.xpose.msra.mxu0 0.0
        %1934 = vmatprep.subr.mxu0 0.0
        %1935 = vmatpush2.xpose.msra.mxu0 0.0
        %1936 = vmatprep.subr.mxu0 0.0
        %1937 = vmatpush2.xpose.msra.mxu0 0.0
        %1938 = vmatprep.subr.mxu0 0.0
        %1939 = vmatpush2.xpose.msra.mxu0 0.0
        %1940 = vmatprep.subr.mxu0 0.0
        %1941 = vmatpush2.xpose.msra.mxu0 0.0
        %1942 = vmatprep.subr.mxu0 0.0
        %1943 = vmatpush2.xpose.msra.mxu0 0.0
        %1944 = vmatprep.subr.mxu0 0.0
        %1945 = vmatpush2.xpose.msra.mxu0 0.0
        %1946 = vmatprep.subr.mxu0 0.0
        %1947 = vmatpush2.xpose.msra.mxu0 0.0
        %1948 = vmatprep.subr.mxu0 0.0
        %1949 = vmatpush2.xpose.msra.mxu0 0.0
        %1950 = vmatprep.subr.mxu0 0.0
        %1951 = vmatpush2.xpose.msra.mxu0 0.0
        %1952 = vmatprep.subr.mxu0 0.0
        %1953 = vmatpush2.xpose.msra.mxu0 0.0
        %1954 = vmatprep.subr.mxu0 0.0
        %1955 = vmatpush2.xpose.msra.mxu0 0.0
        %1956 = vmatprep.subr.mxu0 0.0
        %1957 = vmatpush2.xpose.msra.mxu0 0.0
        %1958 = vmatprep.subr.mxu0 0.0
        %1959 = vmatpush2.xpose.msra.mxu0 0.0
        %1960 = vmatprep.subr.mxu0 0.0
        %1961 = vmatpush2.xpose.msra.mxu0 0.0
        %1962 = vmatprep.mubr.f32.mxu0 0.0
        %v1963 = vand.u32 %v278, 4294901760
        %1964 = vmatmul.mubr.f32.gmra.mxu0 %v1963
        %v1965 = vpop.f32.mrf.mxu0
        %v1966 = vadd.f32 %v1708, %v1965
        %v1967 = vpop.f32.mrf.mxu0
        %1968 = vmatprep.mubr.f32.mxu0 0.0
        %v1969 = vand.u32 %v281, 4294901760
        %1970 = vmatmul.mubr.f32.gmra.mxu0 %v1969
        %v1971 = vpop.f32.mrf.mxu0
        %v1972 = vadd.f32 %v1714, %v1971
        %v1973 = vpop.f32.mrf.mxu0
        %1974 = vmatprep.mubr.f32.mxu0 0.0
        %v1975 = vand.u32 %v284, 4294901760
        %1976 = vmatmul.mubr.f32.gmra.mxu0 %v1975
        %v1977 = vpop.f32.mrf.mxu0
        %v1978 = vadd.f32 %v1720, %v1977
        %v1979 = vpop.f32.mrf.mxu0
        %1980 = vmatprep.mubr.f32.mxu0 0.0
        %v1981 = vand.u32 %v287, 4294901760
        %1982 = vmatmul.mubr.f32.gmra.mxu0 %v1981
        %v1983 = vpop.f32.mrf.mxu0
        %v1984 = vadd.f32 %v1726, %v1983
        %v1985 = vpop.f32.mrf.mxu0
        %1986 = vmatprep.mubr.f32.mxu0 0.0
        %v1987 = vand.u32 %v290, 4294901760
        %1988 = vmatmul.mubr.f32.gmra.mxu0 %v1987
        %v1989 = vpop.f32.mrf.mxu0
        %v1990 = vadd.f32 %v1732, %v1989
        %v1991 = vpop.f32.mrf.mxu0
        %1992 = vmatprep.mubr.f32.mxu0 0.0
        %v1993 = vand.u32 %v293, 4294901760
        %1994 = vmatmul.mubr.f32.gmra.mxu0 %v1993
        %v1995 = vpop.f32.mrf.mxu0
        %v1996 = vadd.f32 %v1738, %v1995
        %v1997 = vpop.f32.mrf.mxu0
        %1998 = vmatprep.mubr.f32.mxu0 0.0
        %v1999 = vand.u32 %v296, 4294901760
        %2000 = vmatmul.mubr.f32.gmra.mxu0 %v1999
        %v2001 = vpop.f32.mrf.mxu0
        %v2002 = vadd.f32 %v1744, %v2001
        %v2003 = vpop.f32.mrf.mxu0
        %2004 = vmatprep.mubr.f32.mxu0 0.0
        %v2005 = vand.u32 %v299, 4294901760
        %2006 = vmatmul.mubr.f32.gmra.mxu0 %v2005
        %v2007 = vpop.f32.mrf.mxu0
        %v2008 = vadd.f32 %v1750, %v2007
        %v2009 = vpop.f32.mrf.mxu0
        %2010 = vmatprep.mubr.f32.mxu0 0.0
        %v2011 = vand.u32 %v302, 4294901760
        %2012 = vmatmul.mubr.f32.gmra.mxu0 %v2011
        %v2013 = vpop.f32.mrf.mxu0
        %v2014 = vadd.f32 %v1756, %v2013
        %v2015 = vpop.f32.mrf.mxu0
        %2016 = vmatprep.mubr.f32.mxu0 0.0
        %v2017 = vand.u32 %v305, 4294901760
        %2018 = vmatmul.mubr.f32.gmra.mxu0 %v2017
        %v2019 = vpop.f32.mrf.mxu0
        %v2020 = vadd.f32 %v1762, %v2019
        %v2021 = vpop.f32.mrf.mxu0
        %2022 = vmatprep.mubr.f32.mxu0 0.0
        %v2023 = vand.u32 %v308, 4294901760
        %2024 = vmatmul.mubr.f32.gmra.mxu0 %v2023
        %v2025 = vpop.f32.mrf.mxu0
        %v2026 = vadd.f32 %v1768, %v2025
        %v2027 = vpop.f32.mrf.mxu0
        %2028 = vmatprep.mubr.f32.mxu0 0.0
        %v2029 = vand.u32 %v311, 4294901760
        %2030 = vmatmul.mubr.f32.gmra.mxu0 %v2029
        %v2031 = vpop.f32.mrf.mxu0
        %v2032 = vadd.f32 %v1774, %v2031
        %v2033 = vpop.f32.mrf.mxu0
        %2034 = vmatprep.mubr.f32.mxu0 0.0
        %v2035 = vand.u32 %v314, 4294901760
        %2036 = vmatmul.mubr.f32.gmra.mxu0 %v2035
        %v2037 = vpop.f32.mrf.mxu0
        %v2038 = vadd.f32 %v1780, %v2037
        %v2039 = vpop.f32.mrf.mxu0
        %2040 = vmatprep.mubr.f32.mxu0 0.0
        %v2041 = vand.u32 %v317, 4294901760
        %2042 = vmatmul.mubr.f32.gmra.mxu0 %v2041
        %v2043 = vpop.f32.mrf.mxu0
        %v2044 = vadd.f32 %v1786, %v2043
        %v2045 = vpop.f32.mrf.mxu0
        %2046 = vmatprep.mubr.f32.mxu0 0.0
        %v2047 = vand.u32 %v320, 4294901760
        %2048 = vmatmul.mubr.f32.gmra.mxu0 %v2047
        %v2049 = vpop.f32.mrf.mxu0
        %v2050 = vadd.f32 %v1792, %v2049
        %v2051 = vpop.f32.mrf.mxu0
        %2052 = vmatprep.mubr.f32.mxu0 0.0
        %v2053 = vand.u32 %v323, 4294901760
        %2054 = vmatmul.mubr.f32.gmra.mxu0 %v2053
        %v2055 = vpop.f32.mrf.mxu0
        %v2056 = vadd.f32 %v1798, %v2055
        %v2057 = vpop.f32.mrf.mxu0
        %2058 = vmatprep.mubr.f32.mxu0 0.0
        %v2059 = vand.u32 %v326, 4294901760
        %2060 = vmatmul.mubr.f32.gmra.mxu0 %v2059
        %v2061 = vpop.f32.mrf.mxu0
        %v2062 = vadd.f32 %v1804, %v2061
        %v2063 = vpop.f32.mrf.mxu0
        %2064 = vmatprep.mubr.f32.mxu0 0.0
        %v2065 = vand.u32 %v329, 4294901760
        %2066 = vmatmul.mubr.f32.gmra.mxu0 %v2065
        %v2067 = vpop.f32.mrf.mxu0
        %v2068 = vadd.f32 %v1810, %v2067
        %v2069 = vpop.f32.mrf.mxu0
        %2070 = vmatprep.mubr.f32.mxu0 0.0
        %v2071 = vand.u32 %v332, 4294901760
        %2072 = vmatmul.mubr.f32.gmra.mxu0 %v2071
        %v2073 = vpop.f32.mrf.mxu0
        %v2074 = vadd.f32 %v1816, %v2073
        %v2075 = vpop.f32.mrf.mxu0
        %2076 = vmatprep.mubr.f32.mxu0 0.0
        %v2077 = vand.u32 %v335, 4294901760
        %2078 = vmatmul.mubr.f32.gmra.mxu0 %v2077
        %v2079 = vpop.f32.mrf.mxu0
        %v2080 = vadd.f32 %v1822, %v2079
        %v2081 = vpop.f32.mrf.mxu0
        %2082 = vmatprep.mubr.f32.mxu0 0.0
        %v2083 = vand.u32 %v338, 4294901760
        %2084 = vmatmul.mubr.f32.gmra.mxu0 %v2083
        %v2085 = vpop.f32.mrf.mxu0
        %v2086 = vadd.f32 %v1828, %v2085
        %v2087 = vpop.f32.mrf.mxu0
        %2088 = vmatprep.mubr.f32.mxu0 0.0
        %v2089 = vand.u32 %v341, 4294901760
        %2090 = vmatmul.mubr.f32.gmra.mxu0 %v2089
        %v2091 = vpop.f32.mrf.mxu0
        %v2092 = vadd.f32 %v1834, %v2091
        %v2093 = vpop.f32.mrf.mxu0
        %2094 = vmatprep.mubr.f32.mxu0 0.0
        %v2095 = vand.u32 %v344, 4294901760
        %2096 = vmatmul.mubr.f32.gmra.mxu0 %v2095
        %v2097 = vpop.f32.mrf.mxu0
        %v2098 = vadd.f32 %v1840, %v2097
        %v2099 = vpop.f32.mrf.mxu0
        %2100 = vmatprep.mubr.f32.mxu0 0.0
        %v2101 = vand.u32 %v347, 4294901760
        %2102 = vmatmul.mubr.f32.gmra.mxu0 %v2101
        %v2103 = vpop.f32.mrf.mxu0
        %v2104 = vadd.f32 %v1846, %v2103
        %v2105 = vpop.f32.mrf.mxu0
        %2106 = vmatprep.mubr.f32.mxu0 0.0
        %v2107 = vand.u32 %v350, 4294901760
        %2108 = vmatmul.mubr.f32.gmra.mxu0 %v2107
        %v2109 = vpop.f32.mrf.mxu0
        %v2110 = vadd.f32 %v1852, %v2109
        %v2111 = vpop.f32.mrf.mxu0
        %2112 = vmatprep.mubr.f32.mxu0 0.0
        %v2113 = vand.u32 %v353, 4294901760
        %2114 = vmatmul.mubr.f32.gmra.mxu0 %v2113
        %v2115 = vpop.f32.mrf.mxu0
        %v2116 = vadd.f32 %v1858, %v2115
        %v2117 = vpop.f32.mrf.mxu0
        %2118 = vmatprep.mubr.f32.mxu0 0.0
        %v2119 = vand.u32 %v356, 4294901760
        %2120 = vmatmul.mubr.f32.gmra.mxu0 %v2119
        %v2121 = vpop.f32.mrf.mxu0
        %v2122 = vadd.f32 %v1864, %v2121
        %v2123 = vpop.f32.mrf.mxu0
        %2124 = vmatprep.mubr.f32.mxu0 0.0
        %v2125 = vand.u32 %v359, 4294901760
        %2126 = vmatmul.mubr.f32.gmra.mxu0 %v2125
        %v2127 = vpop.f32.mrf.mxu0
        %v2128 = vadd.f32 %v1870, %v2127
        %v2129 = vpop.f32.mrf.mxu0
        %2130 = vmatprep.mubr.f32.mxu0 0.0
        %v2131 = vand.u32 %v362, 4294901760
        %2132 = vmatmul.mubr.f32.gmra.mxu0 %v2131
        %v2133 = vpop.f32.mrf.mxu0
        %v2134 = vadd.f32 %v1876, %v2133
        %v2135 = vpop.f32.mrf.mxu0
        %2136 = vmatprep.mubr.f32.mxu0 0.0
        %v2137 = vand.u32 %v365, 4294901760
        %2138 = vmatmul.mubr.f32.gmra.mxu0 %v2137
        %v2139 = vpop.f32.mrf.mxu0
        %v2140 = vadd.f32 %v1882, %v2139
        %v2141 = vpop.f32.mrf.mxu0
        %2142 = vmatprep.mubr.f32.mxu0 0.0
        %v2143 = vand.u32 %v368, 4294901760
        %2144 = vmatmul.mubr.f32.gmra.mxu0 %v2143
        %v2145 = vpop.f32.mrf.mxu0
        %v2146 = vadd.f32 %v1888, %v2145
        %v2147 = vpop.f32.mrf.mxu0
        %2148 = vmatprep.mubr.f32.mxu0 0.0
        %v2149 = vand.u32 %v371, 4294901760
        %2150 = vmatmul.mubr.f32.gmra.mxu0 %v2149
        %v2151 = vpop.f32.mrf.mxu0
        %v2152 = vadd.f32 %v1894, %v2151
        %v2153 = vpop.f32.mrf.mxu0
        %2154 = vdwg.mxu0
        %2155 = vxpose.xlu0.b32.start [1/16] %v1966, 128
        %2156 = vxpose.xlu0.b32.cont [2/16] %v1972, 128
        %2157 = vxpose.xlu0.b32.cont [3/16] %v1978, 128
        %2158 = vxpose.xlu0.b32.cont [4/16] %v1984, 128
        %2159 = vxpose.xlu0.b32.cont [5/16] %v1990, 128
        %2160 = vxpose.xlu0.b32.cont [6/16] %v1996, 128
        %2161 = vxpose.xlu0.b32.cont [7/16] %v2002, 128
        %2162 = vxpose.xlu0.b32.cont [8/16] %v2008, 128
        %2163 = vxpose.xlu0.b32.cont [9/16] %v2014, 128
        %2164 = vxpose.xlu0.b32.cont [10/16] %v2020, 128
        %2165 = vxpose.xlu0.b32.cont [11/16] %v2026, 128
        %2166 = vxpose.xlu0.b32.cont [12/16] %v2032, 128
        %2167 = vxpose.xlu0.b32.cont [13/16] %v2038, 128
        %2168 = vxpose.xlu0.b32.cont [14/16] %v2044, 128
        %2169 = vxpose.xlu0.b32.cont [15/16] %v2050, 128
        %2170 = vxpose.xlu0.b32.end [16/16] %v2056, 128
        %v2171 = vpop.trf.xlu0
        %v2172 = vpop.trf.xlu0
        %v2173 = vpop.trf.xlu0
        %v2174 = vpop.trf.xlu0
        %v2175 = vpop.trf.xlu0
        %v2176 = vpop.trf.xlu0
        %v2177 = vpop.trf.xlu0
        %v2178 = vpop.trf.xlu0
        %v2179 = vpop.trf.xlu0
        %v2180 = vpop.trf.xlu0
        %v2181 = vpop.trf.xlu0
        %v2182 = vpop.trf.xlu0
        %v2183 = vpop.trf.xlu0
        %v2184 = vpop.trf.xlu0
        %v2185 = vpop.trf.xlu0
        %v2186 = vpop.trf.xlu0
        %2187 = vxpose.xlu0.b32.start [1/16] %v2062, 128
        %2188 = vxpose.xlu0.b32.cont [2/16] %v2068, 128
        %2189 = vxpose.xlu0.b32.cont [3/16] %v2074, 128
        %2190 = vxpose.xlu0.b32.cont [4/16] %v2080, 128
        %2191 = vxpose.xlu0.b32.cont [5/16] %v2086, 128
        %2192 = vxpose.xlu0.b32.cont [6/16] %v2092, 128
        %2193 = vxpose.xlu0.b32.cont [7/16] %v2098, 128
        %2194 = vxpose.xlu0.b32.cont [8/16] %v2104, 128
        %2195 = vxpose.xlu0.b32.cont [9/16] %v2110, 128
        %2196 = vxpose.xlu0.b32.cont [10/16] %v2116, 128
        %2197 = vxpose.xlu0.b32.cont [11/16] %v2122, 128
        %2198 = vxpose.xlu0.b32.cont [12/16] %v2128, 128
        %2199 = vxpose.xlu0.b32.cont [13/16] %v2134, 128
        %2200 = vxpose.xlu0.b32.cont [14/16] %v2140, 128
        %2201 = vxpose.xlu0.b32.cont [15/16] %v2146, 128
        %2202 = vxpose.xlu0.b32.end [16/16] %v2152, 128
        %v2203 = vpop.trf.xlu0
        %v2204 = vpop.trf.xlu0
        %v2205 = vpop.trf.xlu0
        %v2206 = vpop.trf.xlu0
        %v2207 = vpop.trf.xlu0
        %v2208 = vpop.trf.xlu0
        %v2209 = vpop.trf.xlu0
        %v2210 = vpop.trf.xlu0
        %v2211 = vpop.trf.xlu0
        %v2212 = vpop.trf.xlu0
        %v2213 = vpop.trf.xlu0
        %v2214 = vpop.trf.xlu0
        %v2215 = vpop.trf.xlu0
        %v2216 = vpop.trf.xlu0
        %v2217 = vpop.trf.xlu0
        %v2218 = vpop.trf.xlu0
        %v2219 = vld [vmem:[%s2] sm:$0xf]
        %2221 = vset.pattern.permute.xlu0 0
        %2222 = vperm.xlu0 %2221, %v2219
        %v2223 = vpop.permute.xlu0 %2222
        %v2225 = vadd.f32 %v2171, %v2223
        %v2226 = vadd.f32 %v2203, %v2223
        %v2227 = vadd.f32 %v2225, %v207
        %v2228 = vadd.f32 %v2226, %v210
        %v2231 = vcombine.low %v2227, %v2228
        %2233 = vst [vmem:[%s204] sm:$0xff] %v2231
        %s2234 = sand.u32 %s112, 1
        %s2235 = scalar_lea.sflag [#allocation4], %s2234
        %s2236 = sand.u32 %s112, 1
        %s2237 = smul.addr %s2236, 8
        %s2238 = scalar_lea.vmem [#allocation5], %s2237
        // Predicated region
        $region37: #{tpu_custom_call.1} parent=31 // pred_check
          %p2239 = pneg %p122
        $region38: #{tpu_custom_call.1} parent=31 // pred_check_branch
          %2241 = sbr.rel (%p2239) target = $region40
        $region39: #{tpu_custom_call.1} parent=31 // pred_region
          %s2242 = smul.u32 2, %s25
          %s2244 = ssub.s32 128, 128
          %2245 = vsyncadd %s2235, %s2244
          %s2246 = smul.addr %s24, 2
          %s2247 = sadd.s32 %s2242, %s2246
          %s2248 = smul.addr %s2247, 64
          %s2249 = scalar_lea.hbm %s3, %s2248
          %s2251 = sshll.u32 %s2238, 4
          %s2252 = int_to_ptr.vmem [resolvable:$true] %s2251
          %2254 = dma.vmem_to_hbm [thread:$0]  %s2252, 128, %s2249, %s2235
        $region40: #{tpu_custom_call.1} parent=31 // pred_fallthru
          _
      $region32: #{tpu_custom_call.1} parent=5 // pred_fallthru
        _
      %p2255 = scmp.le.s32.totalorder 2, %s15
      // Predicated region
      $region41: #{tpu_custom_call.1} parent=5 // pred_check
        %p2256 = pneg %p2255
      $region42: #{tpu_custom_call.1} parent=5 // pred_check_branch
        %2258 = sbr.rel (%p2256) target = $region44
      $region43: #{tpu_custom_call.1} parent=5 // pred_region
        %s2259 = ssub.s32 %s15, 2
        // Predicated region
        $region45: #{tpu_custom_call.1} parent=43 // pred_check
          %p2260 = pneg %p128
        $region46: #{tpu_custom_call.1} parent=43 // pred_check_branch
          %2262 = sbr.rel (%p2260) target = $region48
        $region47: #{tpu_custom_call.1} parent=43 // pred_region
          %s2263 = sand.u32 %s113, 1
          %s2264 = scalar_lea.sflag [#allocation4], %s2263
          %s2265 = sand.u32 %s113, 1
          %s2266 = smul.addr %s2265, 8
          %s2267 = scalar_lea.vmem [#allocation5], %s2266
          %2268 = dma.done %s2264, 128
        $region48: #{tpu_custom_call.1} parent=43 // pred_fallthru
          _
      $region44: #{tpu_custom_call.1} parent=5 // pred_fallthru
        _
    $region6: #{tpu_custom_call.1} parent=1 // loop_footer
      %s19 = sadd.s32 1, %s15
    $region7: #{tpu_custom_call.1} parent=1 // loop_footer_branch
      %14 = sbr.rel target = $region3
    $region8: #{tpu_custom_call.1} parent=1 // loop_exit
      _
    %2269 = vsyncpa [#allocation3], 1
    %s2270 = scalar_lea.sflag [#allocation3], 1
    %2271 = vsyncpa %s2270, 1
    %2272 = vsyncpa [#allocation4], 1
    %s2273 = scalar_lea.sflag [#allocation4], 1
    %2274 = vsyncpa %s2273, 1

</llo_original>
